<compile_context>
chip_gen: v7x
topology: tpu7x:2x2x1
jax: 0.10.0
libtpu: 0.0.40
codegen_flags: <defaults>
</compile_context>

<pallas_src>
import functools

import jax
import jax.numpy as jnp
from jax.experimental import pallas as pl
from jax.experimental.pallas import tpu as pltpu

HIDDEN = 256          # RT-DETR v2 decoder hidden size (fixed by the module)
OUTPUT_DIM = 128      # small stand-in for output_dim=4096 (multiple of 128)
PATCH = 4             # patch size for the synthetic backbone stand-in

IMAGENET_MEAN = (0.485, 0.456, 0.406)
IMAGENET_STD = (0.229, 0.224, 0.225)


# ----------------------------------------------------------------------------
# Host-side helpers (run on weights / for the pure-JAX reference only)
# ----------------------------------------------------------------------------
def extract_patches(image, patch):
    """(B, C, H, W) -> (B, S, C*patch*patch). Reference-only (not used by the
    kernel path — the kernel streams the raw image instead)."""
    b, c, hh, ww = image.shape
    gh, gw = hh // patch, ww // patch
    return (
        image.reshape(b, c, gh, patch, gw, patch)
        .transpose(0, 2, 4, 1, 3, 5)
        .reshape(b, gh * gw, c * patch * patch)
    )


def fold_normalization(w_patch):
    """Fold per-channel (x - mean)/std into the patch-embed weight + bias."""
    k, h = w_patch.shape
    per_c = k // 3
    mean = jnp.repeat(jnp.asarray(IMAGENET_MEAN, jnp.float32), per_c)   # (K,)
    std = jnp.repeat(jnp.asarray(IMAGENET_STD, jnp.float32), per_c)     # (K,)
    w_eff = (w_patch / std[:, None]).astype(jnp.float32)                # (K, H)
    b_eff = (-(mean / std) @ w_patch).reshape(1, h).astype(jnp.float32) # (1, H)
    return w_eff, b_eff


def make_col_select(w_img, patch):
    """(W, P) f32 selection matrix: Msel[w, q] = 1 if w % patch == q."""
    w_mod = jnp.arange(w_img) % patch
    return (w_mod[:, None] == jnp.arange(patch)[None, :]).astype(jnp.float32)


def _pick_tile_h(h_img, c, w_img, budget_bytes=2 * 1024 * 1024):
    """Largest divisor of H that is a multiple of 8 and fits the tile budget."""
    best = 8
    for t in range(8, h_img + 1, 8):
        if h_img % t == 0 and c * t * max(w_img, 128) * 4 <= budget_bytes:
            best = t
    return best


def _vmem_bytes_estimate(c, tile_h, w_img, k, hidden, d, patch):
    lane = lambda n: (n + 127) // 128 * 128
    sub = lambda n: (n + 7) // 8 * 8
    img_tile = c * sub(tile_h) * lane(w_img) * 4
    weights = (sub(w_img) * lane(patch) * 4        # col-select matrix
               + sub(k) * lane(hidden) * 4         # folded patch-embed weight
               + sub(1) * lane(hidden) * 4         # folded bias
               + sub(hidden) * lane(d) * 2         # projection weight (bf16)
               + sub(1) * lane(d) * 4)             # projection bias
    acc = sub(c * 8) * lane(w_img) * 4
    out = sub(1) * lane(d) * 4
    return 2 * img_tile + 2 * weights + acc + 2 * out


# ----------------------------------------------------------------------------
# Fused kernel: image streaming + (hoisted) mean-pool + patch-embed + Linear
#   grid = (B, H // tile_h);  reduction (image-row) axis last, "arbitrary"
# ----------------------------------------------------------------------------
def _fused_kernel(img_ref, wsel_ref, wpe_ref, bpe_ref, wpr_ref, bpr_ref,
                  o_ref, acc_ref, *, n_h, tile_h, channels, patch, inv_s):
    hi = pl.program_id(1)

    @pl.when(hi == 0)
    def _():
        acc_ref[...] = jnp.zeros_like(acc_ref)

    # ---- Streaming phase: pure VPU vreg adds, no MXU/XLU per tile. ----
    # acc[c*8 + j, w] accumulates sum over image rows r with r % 8 == j
    # (tile_h is a multiple of 8, so local row % 8 == global row % 8).
    n_groups = tile_h // 8
    for c in range(channels):
        part = img_ref[c, 0:8, :]
        for g in range(1, n_groups):
            part = part + img_ref[c, g * 8:(g + 1) * 8, :]
        acc_ref[c * 8:(c + 1) * 8, :] += part

    # ---- Finalize: once per batch image, tiny matmuls only. ----
    @pl.when(hi == n_h - 1)
    def _():
        hidden = wpe_ref.shape[1]
        hsum = jnp.zeros((1, hidden), jnp.float32)
        for c in range(channels):
            for p in range(patch):
                # Rows r with r % patch == p live in acc rows {c*8 + p, p+patch, ...}.
                row = acc_ref[c * 8 + p: c * 8 + p + 1, :]
                for j in range(p + patch, 8, patch):
                    row = row + acc_ref[c * 8 + j: c * 8 + j + 1, :]       # (1, W)
                # Column (w % patch == q) selection -> per-(c, p, q) patch sums.
                s_q = jnp.dot(row, wsel_ref[...],
                              preferred_element_type=jnp.float32)          # (1, P)
                # Contract against the matching patch-embed weight rows.
                base = (c * patch + p) * patch
                w_cp = wpe_ref[base: base + patch, :]                       # (P, H)
                hsum = hsum + jnp.dot(s_q, w_cp,
                                      preferred_element_type=jnp.float32)  # (1, H)
        # mean over S patches + folded-normalization bias.
        pooled = hsum * inv_s + bpe_ref[...]                                # (1, 256)
        # Projection: bf16 operands, f32 accumulation (MXU-native on all gens).
        out = jnp.dot(pooled.astype(wpr_ref.dtype), wpr_ref[...],
                      preferred_element_type=jnp.float32) + bpr_ref[...]    # (1, D)
        o_ref[...] = out.astype(o_ref.dtype).reshape(o_ref.shape)


def fused_image_pool_project(image, w_eff, b_eff, w_proj, b_proj, *,
                             patch=PATCH, tile_h=None):
    b, c, h_img, w_img = image.shape
    k, hidden = w_eff.shape
    d = w_proj.shape[1]

    assert h_img % 8 == 0, "image height must be a multiple of 8"
    assert h_img % patch == 0 and w_img % patch == 0
    assert 8 % patch == 0, "patch size must divide 8 for the row grouping"
    assert k == c * patch * patch

    if tile_h is None:
        tile_h = _pick_tile_h(h_img, c, w_img)
    assert h_img % tile_h == 0 and tile_h % 8 == 0
    n_h = h_img // tile_h
    n_patches = (h_img // patch) * (w_img // patch)

    wsel = make_col_select(w_img, patch)                       # (W, P) f32
    w_proj_bf = w_proj.astype(jnp.bfloat16)                    # (256, D) bf16

    kernel = functools.partial(
        _fused_kernel, n_h=n_h, tile_h=tile_h, channels=c, patch=patch,
        inv_s=1.0 / float(n_patches))

    vmem_limit = min(48 * 1024 * 1024,
                     max(2 * _vmem_bytes_estimate(c, tile_h, w_img, k, hidden,
                                                  d, patch),
                         8 * 1024 * 1024))

    out = pl.pallas_call(
        kernel,
        out_shape=jax.ShapeDtypeStruct((b, 1, d), jnp.float32),
        grid_spec=pltpu.PrefetchScalarGridSpec(
            num_scalar_prefetch=0,
            grid=(b, n_h),                                     # reduction axis last
            in_specs=[
                # Raw NCHW image strip: (C, tile_h, W) per step, batch squeezed.
                pl.BlockSpec((pl.Squeezed(), c, tile_h, w_img),
                             lambda bi, hi: (bi, 0, hi, 0)),
                pl.BlockSpec((w_img, patch), lambda bi, hi: (0, 0)),
                pl.BlockSpec((k, hidden), lambda bi, hi: (0, 0)),
                pl.BlockSpec((1, hidden), lambda bi, hi: (0, 0)),
                pl.BlockSpec((hidden, d), lambda bi, hi: (0, 0)),
                pl.BlockSpec((1, d), lambda bi, hi: (0, 0)),
            ],
            out_specs=pl.BlockSpec((1, 1, d), lambda bi, hi: (bi, 0, 0)),
            scratch_shapes=[pltpu.VMEM((c * 8, w_img), jnp.float32)],
        ),
        compiler_params=pltpu.CompilerParams(
            dimension_semantics=("parallel", "arbitrary"),
            vmem_limit_bytes=int(vmem_limit),
        ),
    )(image, wsel, w_eff, b_eff, w_proj_bf, b_proj)
    return out.reshape(b, d)


# ----------------------------------------------------------------------------
# Full forward (weight prep in plain JAX, all image-sized work in the kernel)
# ----------------------------------------------------------------------------
def iris_rtdetr_vision_encoder_forward(image, params, *, tile_h=None):
    # TODO(synk): RTDetrV2Model backbone/encoder/decoder + AutoImageProcessor
    # resize have no self-contained Pallas equivalent; a deterministic linear
    # patch-embedding stand-in produces last_hidden_state, with the processor's
    # per-channel normalization folded into its weight/bias.  The sequence
    # mean-pool and nn.Linear(256, output_dim) match the module exactly.
    w_eff, b_eff = fold_normalization(params["w_patch"])
    return fused_image_pool_project(
        image, w_eff, b_eff, params["w_proj"], params["b_proj"], tile_h=tile_h)


def init_params(key, in_features_patch):
    k1, k2, k3 = jax.random.split(key, 3)
    w_patch = (
        jax.random.normal(k1, (in_features_patch, HIDDEN), jnp.float32) * 0.02
    )
    # nn.Linear(256, output_dim) default init: U(-1/sqrt(in), 1/sqrt(in)).
    bound = 1.0 / jnp.sqrt(jnp.float32(HIDDEN))
    w_proj = jax.random.uniform(
        k2, (HIDDEN, OUTPUT_DIM), jnp.float32, minval=-bound, maxval=bound
    )
    b_proj = jax.random.uniform(
        k3, (1, OUTPUT_DIM), jnp.float32, minval=-bound, maxval=bound
    )
    return {"w_patch": w_patch, "w_proj": w_proj, "b_proj": b_proj}


if __name__ == "__main__":
    key = jax.random.PRNGKey(0)
    k_img, k_par = jax.random.split(key)

    B, C, H_IMG, W_IMG = 2, 3, 32, 32                      # small NCHW batch
    image = jax.random.uniform(k_img, (B, C, H_IMG, W_IMG), jnp.float32)
    params = init_params(k_par, C * PATCH * PATCH)

    # tile_h=8 -> 4 reduction tiles per image: exercises the accumulator path.
    fwd = jax.jit(functools.partial(iris_rtdetr_vision_encoder_forward,
                                    tile_h=8))
    out = jax.block_until_ready(fwd(image, params))

    # Pure-JAX f32 reference of the exact stand-in semantics:
    # normalize -> patch-embed -> mean over seq -> Linear(256, OUTPUT_DIM).
    mean = jnp.asarray(IMAGENET_MEAN, jnp.float32).reshape(1, 3, 1, 1)
    std = jnp.asarray(IMAGENET_STD, jnp.float32).reshape(1, 3, 1, 1)
    xn = (image - mean) / std
    ref_patches = extract_patches(xn, PATCH)
    lhs = jnp.einsum("bsk,kh->bsh", ref_patches, params["w_patch"])
    ref = jnp.mean(lhs, axis=1) @ params["w_proj"] + params["b_proj"]

    assert out.shape == (B, OUTPUT_DIM)
    # bf16 projection operands vs f32 reference -> loose-ish tolerance.
    assert jnp.allclose(out, ref, atol=2e-2, rtol=2e-2), float(
        jnp.max(jnp.abs(out - ref))
    )
    print("KERNEL_OK")
</pallas_src>

<mosaic_0001>
module attributes {stable_mosaic.version = 11 : i64} {
  func.func @_fused_kernel(%arg0: i32, %arg1: i32, %arg2: memref<1x3x8x32xf32, #tpu.memory_space<vmem>>, %arg3: memref<32x4xf32, #tpu.memory_space<vmem>>, %arg4: memref<48x256xf32, #tpu.memory_space<vmem>>, %arg5: memref<1x256xf32, #tpu.memory_space<vmem>>, %arg6: memref<256x128xbf16, #tpu.memory_space<vmem>>, %arg7: memref<1x128xf32, #tpu.memory_space<vmem>>, %arg8: memref<1x1x128xf32, #tpu.memory_space<vmem>>, %arg9: memref<24x32xf32, #tpu.memory_space<vmem>>) attributes {dimension_semantics = [#tpu.dimension_semantics<parallel>, #tpu.dimension_semantics<arbitrary>], iteration_bounds = array<i64: 2, 4>, scalar_prefetch = 0 : i64, scratch_operands = 1 : i64, tpu.core_type = #tpu.core_type<tc>, window_params = [{transform_indices = @transform_0, window_bounds = array<i64: 1, 3, 8, 32>}, {pipeline_mode = #tpu.pipeline_mode<synchronous>, transform_indices = @transform_1, window_bounds = array<i64: 32, 4>}, {pipeline_mode = #tpu.pipeline_mode<synchronous>, transform_indices = @transform_2, window_bounds = array<i64: 48, 256>}, {pipeline_mode = #tpu.pipeline_mode<synchronous>, transform_indices = @transform_3, window_bounds = array<i64: 1, 256>}, {pipeline_mode = #tpu.pipeline_mode<synchronous>, transform_indices = @transform_4, window_bounds = array<i64: 256, 128>}, {pipeline_mode = #tpu.pipeline_mode<synchronous>, transform_indices = @transform_5, window_bounds = array<i64: 1, 128>}, {transform_indices = @transform_6, window_bounds = array<i64: 1, 1, 128>}]} {
    %c0_i32 = arith.constant 0 : i32
    %0 = arith.cmpi eq, %arg1, %c0_i32 : i32
    %1 = arith.extui %0 : i1 to i32
    %c0_i32_0 = arith.constant 0 : i32
    %2 = arith.cmpi ne, %1, %c0_i32_0 : i32
    scf.if %2 {
      %cst = arith.constant 0.000000e+00 : f32
      %21 = vector.broadcast %cst : f32 to vector<24x32xf32>
      %c0_21 = arith.constant 0 : index
      %c0_22 = arith.constant 0 : index
      %22 = vector.load %arg9[%c0_21, %c0_22] : memref<24x32xf32, #tpu.memory_space<vmem>>, vector<24x32xf32>
      tpu.vector_store %arg9[%c0_21, %c0_22], %21 {strides = array<i32>} : memref<24x32xf32, #tpu.memory_space<vmem>>, vector<24x32xf32>,
    } else {
    }
    %c0 = arith.constant 0 : index
    %c0_1 = arith.constant 0 : index
    %c0_2 = arith.constant 0 : index
    %c0_3 = arith.constant 0 : index
    %3 = vector.load %arg2[%c0, %c0_1, %c0_2, %c0_3] : memref<1x3x8x32xf32, #tpu.memory_space<vmem>>, vector<1x1x8x32xf32>
    %4 = vector.shape_cast %3 : vector<1x1x8x32xf32> to vector<8x32xf32>
    %c0_4 = arith.constant 0 : index
    %c0_5 = arith.constant 0 : index
    %5 = vector.load %arg9[%c0_4, %c0_5] : memref<24x32xf32, #tpu.memory_space<vmem>>, vector<8x32xf32>
    %6 = arith.addf %5, %4 : vector<8x32xf32>
    %c0_6 = arith.constant 0 : index
    %c0_7 = arith.constant 0 : index
    %7 = vector.load %arg9[%c0_6, %c0_7] : memref<24x32xf32, #tpu.memory_space<vmem>>, vector<8x32xf32>
    tpu.vector_store %arg9[%c0_6, %c0_7], %6 {strides = array<i32>} : memref<24x32xf32, #tpu.memory_space<vmem>>, vector<8x32xf32>,
    %c0_8 = arith.constant 0 : index
    %c1 = arith.constant 1 : index
    %c0_9 = arith.constant 0 : index
    %c0_10 = arith.constant 0 : index
    %8 = vector.load %arg2[%c0_8, %c1, %c0_9, %c0_10] : memref<1x3x8x32xf32, #tpu.memory_space<vmem>>, vector<1x1x8x32xf32>
    %9 = vector.shape_cast %8 : vector<1x1x8x32xf32> to vector<8x32xf32>
    %c8 = arith.constant 8 : index
    %c0_11 = arith.constant 0 : index
    %10 = vector.load %arg9[%c8, %c0_11] : memref<24x32xf32, #tpu.memory_space<vmem>>, vector<8x32xf32>
    %11 = arith.addf %10, %9 : vector<8x32xf32>
    %c8_12 = arith.constant 8 : index
    %c0_13 = arith.constant 0 : index
    %12 = vector.load %arg9[%c8_12, %c0_13] : memref<24x32xf32, #tpu.memory_space<vmem>>, vector<8x32xf32>
    tpu.vector_store %arg9[%c8_12, %c0_13], %11 {strides = array<i32>} : memref<24x32xf32, #tpu.memory_space<vmem>>, vector<8x32xf32>,
    %c0_14 = arith.constant 0 : index
    %c2 = arith.constant 2 : index
    %c0_15 = arith.constant 0 : index
    %c0_16 = arith.constant 0 : index
    %13 = vector.load %arg2[%c0_14, %c2, %c0_15, %c0_16] : memref<1x3x8x32xf32, #tpu.memory_space<vmem>>, vector<1x1x8x32xf32>
    %14 = vector.shape_cast %13 : vector<1x1x8x32xf32> to vector<8x32xf32>
    %c16 = arith.constant 16 : index
    %c0_17 = arith.constant 0 : index
    %15 = vector.load %arg9[%c16, %c0_17] : memref<24x32xf32, #tpu.memory_space<vmem>>, vector<8x32xf32>
    %16 = arith.addf %15, %14 : vector<8x32xf32>
    %c16_18 = arith.constant 16 : index
    %c0_19 = arith.constant 0 : index
    %17 = vector.load %arg9[%c16_18, %c0_19] : memref<24x32xf32, #tpu.memory_space<vmem>>, vector<8x32xf32>
    tpu.vector_store %arg9[%c16_18, %c0_19], %16 {strides = array<i32>} : memref<24x32xf32, #tpu.memory_space<vmem>>, vector<8x32xf32>,
    %c3_i32 = arith.constant 3 : i32
    %18 = arith.cmpi eq, %arg1, %c3_i32 : i32
    %19 = arith.extui %18 : i1 to i32
    %c0_i32_20 = arith.constant 0 : i32
    %20 = arith.cmpi ne, %19, %c0_i32_20 : i32
    scf.if %20 {
      %cst = arith.constant 0.000000e+00 : f32
      %21 = vector.broadcast %cst : f32 to vector<1x256xf32>
      %c0_21 = arith.constant 0 : index
      %c0_22 = arith.constant 0 : index
      %22 = vector.load %arg9[%c0_21, %c0_22] : memref<24x32xf32, #tpu.memory_space<vmem>>, vector<1x32xf32>
      %c4 = arith.constant 4 : index
      %c0_23 = arith.constant 0 : index
      %23 = vector.load %arg9[%c4, %c0_23] : memref<24x32xf32, #tpu.memory_space<vmem>>, vector<1x32xf32>
      %24 = arith.addf %22, %23 : vector<1x32xf32>
      %c0_24 = arith.constant 0 : index
      %c0_25 = arith.constant 0 : index
      %25 = vector.load %arg3[%c0_24, %c0_25] : memref<32x4xf32, #tpu.memory_space<vmem>>, vector<32x4xf32>
      %cst_26 = arith.constant dense<0.000000e+00> : vector<1x4xf32>
      %26 = tpu.matmul %24, %25, %cst_26 {dimension_numbers = #tpu.dot_dimension_numbers<[1], [0], [0], [1], [0, 0, 1, 1], [], []>} : vector<1x32xf32>, vector<32x4xf32>, vector<1x4xf32> -> vector<1x4xf32>
      %c0_27 = arith.constant 0 : index
      %c0_28 = arith.constant 0 : index
      %27 = vector.load %arg4[%c0_27, %c0_28] : memref<48x256xf32, #tpu.memory_space<vmem>>, vector<4x256xf32>
      %cst_29 = arith.constant dense<0.000000e+00> : vector<1x256xf32>
      %28 = tpu.matmul %26, %27, %cst_29 {dimension_numbers = #tpu.dot_dimension_numbers<[1], [0], [0], [1], [0, 0, 1, 1], [], []>} : vector<1x4xf32>, vector<4x256xf32>, vector<1x256xf32> -> vector<1x256xf32>
      %29 = arith.addf %21, %28 : vector<1x256xf32>
      %c1_30 = arith.constant 1 : index
      %c0_31 = arith.constant 0 : index
      %30 = vector.load %arg9[%c1_30, %c0_31] : memref<24x32xf32, #tpu.memory_space<vmem>>, vector<1x32xf32>
      %c5 = arith.constant 5 : index
      %c0_32 = arith.constant 0 : index
      %31 = vector.load %arg9[%c5, %c0_32] : memref<24x32xf32, #tpu.memory_space<vmem>>, vector<1x32xf32>
      %32 = arith.addf %30, %31 : vector<1x32xf32>
      %c0_33 = arith.constant 0 : index
      %c0_34 = arith.constant 0 : index
      %33 = vector.load %arg3[%c0_33, %c0_34] : memref<32x4xf32, #tpu.memory_space<vmem>>, vector<32x4xf32>
      %cst_35 = arith.constant dense<0.000000e+00> : vector<1x4xf32>
      %34 = tpu.matmul %32, %33, %cst_35 {dimension_numbers = #tpu.dot_dimension_numbers<[1], [0], [0], [1], [0, 0, 1, 1], [], []>} : vector<1x32xf32>, vector<32x4xf32>, vector<1x4xf32> -> vector<1x4xf32>
      %c4_36 = arith.constant 4 : index
      %c0_37 = arith.constant 0 : index
      %35 = vector.load %arg4[%c4_36, %c0_37] : memref<48x256xf32, #tpu.memory_space<vmem>>, vector<4x256xf32>
      %cst_38 = arith.constant dense<0.000000e+00> : vector<1x256xf32>
      %36 = tpu.matmul %34, %35, %cst_38 {dimension_numbers = #tpu.dot_dimension_numbers<[1], [0], [0], [1], [0, 0, 1, 1], [], []>} : vector<1x4xf32>, vector<4x256xf32>, vector<1x256xf32> -> vector<1x256xf32>
      %37 = arith.addf %29, %36 : vector<1x256xf32>
      %c2_39 = arith.constant 2 : index
      %c0_40 = arith.constant 0 : index
      %38 = vector.load %arg9[%c2_39, %c0_40] : memref<24x32xf32, #tpu.memory_space<vmem>>, vector<1x32xf32>
      %c6 = arith.constant 6 : index
      %c0_41 = arith.constant 0 : index
      %39 = vector.load %arg9[%c6, %c0_41] : memref<24x32xf32, #tpu.memory_space<vmem>>, vector<1x32xf32>
      %40 = arith.addf %38, %39 : vector<1x32xf32>
      %c0_42 = arith.constant 0 : index
      %c0_43 = arith.constant 0 : index
      %41 = vector.load %arg3[%c0_42, %c0_43] : memref<32x4xf32, #tpu.memory_space<vmem>>, vector<32x4xf32>
      %cst_44 = arith.constant dense<0.000000e+00> : vector<1x4xf32>
      %42 = tpu.matmul %40, %41, %cst_44 {dimension_numbers = #tpu.dot_dimension_numbers<[1], [0], [0], [1], [0, 0, 1, 1], [], []>} : vector<1x32xf32>, vector<32x4xf32>, vector<1x4xf32> -> vector<1x4xf32>
      %c8_45 = arith.constant 8 : index
      %c0_46 = arith.constant 0 : index
      %43 = vector.load %arg4[%c8_45, %c0_46] : memref<48x256xf32, #tpu.memory_space<vmem>>, vector<4x256xf32>
      %cst_47 = arith.constant dense<0.000000e+00> : vector<1x256xf32>
      %44 = tpu.matmul %42, %43, %cst_47 {dimension_numbers = #tpu.dot_dimension_numbers<[1], [0], [0], [1], [0, 0, 1, 1], [], []>} : vector<1x4xf32>, vector<4x256xf32>, vector<1x256xf32> -> vector<1x256xf32>
      %45 = arith.addf %37, %44 : vector<1x256xf32>
      %c3 = arith.constant 3 : index
      %c0_48 = arith.constant 0 : index
      %46 = vector.load %arg9[%c3, %c0_48] : memref<24x32xf32, #tpu.memory_space<vmem>>, vector<1x32xf32>
      %c7 = arith.constant 7 : index
      %c0_49 = arith.constant 0 : index
      %47 = vector.load %arg9[%c7, %c0_49] : memref<24x32xf32, #tpu.memory_space<vmem>>, vector<1x32xf32>
      %48 = arith.addf %46, %47 : vector<1x32xf32>
      %c0_50 = arith.constant 0 : index
      %c0_51 = arith.constant 0 : index
      %49 = vector.load %arg3[%c0_50, %c0_51] : memref<32x4xf32, #tpu.memory_space<vmem>>, vector<32x4xf32>
      %cst_52 = arith.constant dense<0.000000e+00> : vector<1x4xf32>
      %50 = tpu.matmul %48, %49, %cst_52 {dimension_numbers = #tpu.dot_dimension_numbers<[1], [0], [0], [1], [0, 0, 1, 1], [], []>} : vector<1x32xf32>, vector<32x4xf32>, vector<1x4xf32> -> vector<1x4xf32>
      %c12 = arith.constant 12 : index
      %c0_53 = arith.constant 0 : index
      %51 = vector.load %arg4[%c12, %c0_53] : memref<48x256xf32, #tpu.memory_space<vmem>>, vector<4x256xf32>
      %cst_54 = arith.constant dense<0.000000e+00> : vector<1x256xf32>
      %52 = tpu.matmul %50, %51, %cst_54 {dimension_numbers = #tpu.dot_dimension_numbers<[1], [0], [0], [1], [0, 0, 1, 1], [], []>} : vector<1x4xf32>, vector<4x256xf32>, vector<1x256xf32> -> vector<1x256xf32>
      %53 = arith.addf %45, %52 : vector<1x256xf32>
      %c8_55 = arith.constant 8 : index
      %c0_56 = arith.constant 0 : index
      %54 = vector.load %arg9[%c8_55, %c0_56] : memref<24x32xf32, #tpu.memory_space<vmem>>, vector<1x32xf32>
      %c12_57 = arith.constant 12 : index
      %c0_58 = arith.constant 0 : index
      %55 = vector.load %arg9[%c12_57, %c0_58] : memref<24x32xf32, #tpu.memory_space<vmem>>, vector<1x32xf32>
      %56 = arith.addf %54, %55 : vector<1x32xf32>
      %c0_59 = arith.constant 0 : index
      %c0_60 = arith.constant 0 : index
      %57 = vector.load %arg3[%c0_59, %c0_60] : memref<32x4xf32, #tpu.memory_space<vmem>>, vector<32x4xf32>
      %cst_61 = arith.constant dense<0.000000e+00> : vector<1x4xf32>
      %58 = tpu.matmul %56, %57, %cst_61 {dimension_numbers = #tpu.dot_dimension_numbers<[1], [0], [0], [1], [0, 0, 1, 1], [], []>} : vector<1x32xf32>, vector<32x4xf32>, vector<1x4xf32> -> vector<1x4xf32>
      %c16_62 = arith.constant 16 : index
      %c0_63 = arith.constant 0 : index
      %59 = vector.load %arg4[%c16_62, %c0_63] : memref<48x256xf32, #tpu.memory_space<vmem>>, vector<4x256xf32>
      %cst_64 = arith.constant dense<0.000000e+00> : vector<1x256xf32>
      %60 = tpu.matmul %58, %59, %cst_64 {dimension_numbers = #tpu.dot_dimension_numbers<[1], [0], [0], [1], [0, 0, 1, 1], [], []>} : vector<1x4xf32>, vector<4x256xf32>, vector<1x256xf32> -> vector<1x256xf32>
      %61 = arith.addf %53, %60 : vector<1x256xf32>
      %c9 = arith.constant 9 : index
      %c0_65 = arith.constant 0 : index
      %62 = vector.load %arg9[%c9, %c0_65] : memref<24x32xf32, #tpu.memory_space<vmem>>, vector<1x32xf32>
      %c13 = arith.constant 13 : index
      %c0_66 = arith.constant 0 : index
      %63 = vector.load %arg9[%c13, %c0_66] : memref<24x32xf32, #tpu.memory_space<vmem>>, vector<1x32xf32>
      %64 = arith.addf %62, %63 : vector<1x32xf32>
      %c0_67 = arith.constant 0 : index
      %c0_68 = arith.constant 0 : index
      %65 = vector.load %arg3[%c0_67, %c0_68] : memref<32x4xf32, #tpu.memory_space<vmem>>, vector<32x4xf32>
      %cst_69 = arith.constant dense<0.000000e+00> : vector<1x4xf32>
      %66 = tpu.matmul %64, %65, %cst_69 {dimension_numbers = #tpu.dot_dimension_numbers<[1], [0], [0], [1], [0, 0, 1, 1], [], []>} : vector<1x32xf32>, vector<32x4xf32>, vector<1x4xf32> -> vector<1x4xf32>
      %c20 = arith.constant 20 : index
      %c0_70 = arith.constant 0 : index
      %67 = vector.load %arg4[%c20, %c0_70] : memref<48x256xf32, #tpu.memory_space<vmem>>, vector<4x256xf32>
      %cst_71 = arith.constant dense<0.000000e+00> : vector<1x256xf32>
      %68 = tpu.matmul %66, %67, %cst_71 {dimension_numbers = #tpu.dot_dimension_numbers<[1], [0], [0], [1], [0, 0, 1, 1], [], []>} : vector<1x4xf32>, vector<4x256xf32>, vector<1x256xf32> -> vector<1x256xf32>
      %69 = arith.addf %61, %68 : vector<1x256xf32>
      %c10 = arith.constant 10 : index
      %c0_72 = arith.constant 0 : index
      %70 = vector.load %arg9[%c10, %c0_72] : memref<24x32xf32, #tpu.memory_space<vmem>>, vector<1x32xf32>
      %c14 = arith.constant 14 : index
      %c0_73 = arith.constant 0 : index
      %71 = vector.load %arg9[%c14, %c0_73] : memref<24x32xf32, #tpu.memory_space<vmem>>, vector<1x32xf32>
      %72 = arith.addf %70, %71 : vector<1x32xf32>
      %c0_74 = arith.constant 0 : index
      %c0_75 = arith.constant 0 : index
      %73 = vector.load %arg3[%c0_74, %c0_75] : memref<32x4xf32, #tpu.memory_space<vmem>>, vector<32x4xf32>
      %cst_76 = arith.constant dense<0.000000e+00> : vector<1x4xf32>
      %74 = tpu.matmul %72, %73, %cst_76 {dimension_numbers = #tpu.dot_dimension_numbers<[1], [0], [0], [1], [0, 0, 1, 1], [], []>} : vector<1x32xf32>, vector<32x4xf32>, vector<1x4xf32> -> vector<1x4xf32>
      %c24 = arith.constant 24 : index
      %c0_77 = arith.constant 0 : index
      %75 = vector.load %arg4[%c24, %c0_77] : memref<48x256xf32, #tpu.memory_space<vmem>>, vector<4x256xf32>
      %cst_78 = arith.constant dense<0.000000e+00> : vector<1x256xf32>
      %76 = tpu.matmul %74, %75, %cst_78 {dimension_numbers = #tpu.dot_dimension_numbers<[1], [0], [0], [1], [0, 0, 1, 1], [], []>} : vector<1x4xf32>, vector<4x256xf32>, vector<1x256xf32> -> vector<1x256xf32>
      %77 = arith.addf %69, %76 : vector<1x256xf32>
      %c11 = arith.constant 11 : index
      %c0_79 = arith.constant 0 : index
      %78 = vector.load %arg9[%c11, %c0_79] : memref<24x32xf32, #tpu.memory_space<vmem>>, vector<1x32xf32>
      %c15 = arith.constant 15 : index
      %c0_80 = arith.constant 0 : index
      %79 = vector.load %arg9[%c15, %c0_80] : memref<24x32xf32, #tpu.memory_space<vmem>>, vector<1x32xf32>
      %80 = arith.addf %78, %79 : vector<1x32xf32>
      %c0_81 = arith.constant 0 : index
      %c0_82 = arith.constant 0 : index
      %81 = vector.load %arg3[%c0_81, %c0_82] : memref<32x4xf32, #tpu.memory_space<vmem>>, vector<32x4xf32>
      %cst_83 = arith.constant dense<0.000000e+00> : vector<1x4xf32>
      %82 = tpu.matmul %80, %81, %cst_83 {dimension_numbers = #tpu.dot_dimension_numbers<[1], [0], [0], [1], [0, 0, 1, 1], [], []>} : vector<1x32xf32>, vector<32x4xf32>, vector<1x4xf32> -> vector<1x4xf32>
      %c28 = arith.constant 28 : index
      %c0_84 = arith.constant 0 : index
      %83 = vector.load %arg4[%c28, %c0_84] : memref<48x256xf32, #tpu.memory_space<vmem>>, vector<4x256xf32>
      %cst_85 = arith.constant dense<0.000000e+00> : vector<1x256xf32>
      %84 = tpu.matmul %82, %83, %cst_85 {dimension_numbers = #tpu.dot_dimension_numbers<[1], [0], [0], [1], [0, 0, 1, 1], [], []>} : vector<1x4xf32>, vector<4x256xf32>, vector<1x256xf32> -> vector<1x256xf32>
      %85 = arith.addf %77, %84 : vector<1x256xf32>
      %c16_86 = arith.constant 16 : index
      %c0_87 = arith.constant 0 : index
      %86 = vector.load %arg9[%c16_86, %c0_87] : memref<24x32xf32, #tpu.memory_space<vmem>>, vector<1x32xf32>
      %c20_88 = arith.constant 20 : index
      %c0_89 = arith.constant 0 : index
      %87 = vector.load %arg9[%c20_88, %c0_89] : memref<24x32xf32, #tpu.memory_space<vmem>>, vector<1x32xf32>
      %88 = arith.addf %86, %87 : vector<1x32xf32>
      %c0_90 = arith.constant 0 : index
      %c0_91 = arith.constant 0 : index
      %89 = vector.load %arg3[%c0_90, %c0_91] : memref<32x4xf32, #tpu.memory_space<vmem>>, vector<32x4xf32>
      %cst_92 = arith.constant dense<0.000000e+00> : vector<1x4xf32>
      %90 = tpu.matmul %88, %89, %cst_92 {dimension_numbers = #tpu.dot_dimension_numbers<[1], [0], [0], [1], [0, 0, 1, 1], [], []>} : vector<1x32xf32>, vector<32x4xf32>, vector<1x4xf32> -> vector<1x4xf32>
      %c32 = arith.constant 32 : index
      %c0_93 = arith.constant 0 : index
      %91 = vector.load %arg4[%c32, %c0_93] : memref<48x256xf32, #tpu.memory_space<vmem>>, vector<4x256xf32>
      %cst_94 = arith.constant dense<0.000000e+00> : vector<1x256xf32>
      %92 = tpu.matmul %90, %91, %cst_94 {dimension_numbers = #tpu.dot_dimension_numbers<[1], [0], [0], [1], [0, 0, 1, 1], [], []>} : vector<1x4xf32>, vector<4x256xf32>, vector<1x256xf32> -> vector<1x256xf32>
      %93 = arith.addf %85, %92 : vector<1x256xf32>
      %c17 = arith.constant 17 : index
      %c0_95 = arith.constant 0 : index
      %94 = vector.load %arg9[%c17, %c0_95] : memref<24x32xf32, #tpu.memory_space<vmem>>, vector<1x32xf32>
      %c21 = arith.constant 21 : index
      %c0_96 = arith.constant 0 : index
      %95 = vector.load %arg9[%c21, %c0_96] : memref<24x32xf32, #tpu.memory_space<vmem>>, vector<1x32xf32>
      %96 = arith.addf %94, %95 : vector<1x32xf32>
      %c0_97 = arith.constant 0 : index
      %c0_98 = arith.constant 0 : index
      %97 = vector.load %arg3[%c0_97, %c0_98] : memref<32x4xf32, #tpu.memory_space<vmem>>, vector<32x4xf32>
      %cst_99 = arith.constant dense<0.000000e+00> : vector<1x4xf32>
      %98 = tpu.matmul %96, %97, %cst_99 {dimension_numbers = #tpu.dot_dimension_numbers<[1], [0], [0], [1], [0, 0, 1, 1], [], []>} : vector<1x32xf32>, vector<32x4xf32>, vector<1x4xf32> -> vector<1x4xf32>
      %c36 = arith.constant 36 : index
      %c0_100 = arith.constant 0 : index
      %99 = vector.load %arg4[%c36, %c0_100] : memref<48x256xf32, #tpu.memory_space<vmem>>, vector<4x256xf32>
      %cst_101 = arith.constant dense<0.000000e+00> : vector<1x256xf32>
      %100 = tpu.matmul %98, %99, %cst_101 {dimension_numbers = #tpu.dot_dimension_numbers<[1], [0], [0], [1], [0, 0, 1, 1], [], []>} : vector<1x4xf32>, vector<4x256xf32>, vector<1x256xf32> -> vector<1x256xf32>
      %101 = arith.addf %93, %100 : vector<1x256xf32>
      %c18 = arith.constant 18 : index
      %c0_102 = arith.constant 0 : index
      %102 = vector.load %arg9[%c18, %c0_102] : memref<24x32xf32, #tpu.memory_space<vmem>>, vector<1x32xf32>
      %c22 = arith.constant 22 : index
      %c0_103 = arith.constant 0 : index
      %103 = vector.load %arg9[%c22, %c0_103] : memref<24x32xf32, #tpu.memory_space<vmem>>, vector<1x32xf32>
      %104 = arith.addf %102, %103 : vector<1x32xf32>
      %c0_104 = arith.constant 0 : index
      %c0_105 = arith.constant 0 : index
      %105 = vector.load %arg3[%c0_104, %c0_105] : memref<32x4xf32, #tpu.memory_space<vmem>>, vector<32x4xf32>
      %cst_106 = arith.constant dense<0.000000e+00> : vector<1x4xf32>
      %106 = tpu.matmul %104, %105, %cst_106 {dimension_numbers = #tpu.dot_dimension_numbers<[1], [0], [0], [1], [0, 0, 1, 1], [], []>} : vector<1x32xf32>, vector<32x4xf32>, vector<1x4xf32> -> vector<1x4xf32>
      %c40 = arith.constant 40 : index
      %c0_107 = arith.constant 0 : index
      %107 = vector.load %arg4[%c40, %c0_107] : memref<48x256xf32, #tpu.memory_space<vmem>>, vector<4x256xf32>
      %cst_108 = arith.constant dense<0.000000e+00> : vector<1x256xf32>
      %108 = tpu.matmul %106, %107, %cst_108 {dimension_numbers = #tpu.dot_dimension_numbers<[1], [0], [0], [1], [0, 0, 1, 1], [], []>} : vector<1x4xf32>, vector<4x256xf32>, vector<1x256xf32> -> vector<1x256xf32>
      %109 = arith.addf %101, %108 : vector<1x256xf32>
      %c19 = arith.constant 19 : index
      %c0_109 = arith.constant 0 : index
      %110 = vector.load %arg9[%c19, %c0_109] : memref<24x32xf32, #tpu.memory_space<vmem>>, vector<1x32xf32>
      %c23 = arith.constant 23 : index
      %c0_110 = arith.constant 0 : index
      %111 = vector.load %arg9[%c23, %c0_110] : memref<24x32xf32, #tpu.memory_space<vmem>>, vector<1x32xf32>
      %112 = arith.addf %110, %111 : vector<1x32xf32>
      %c0_111 = arith.constant 0 : index
      %c0_112 = arith.constant 0 : index
      %113 = vector.load %arg3[%c0_111, %c0_112] : memref<32x4xf32, #tpu.memory_space<vmem>>, vector<32x4xf32>
      %cst_113 = arith.constant dense<0.000000e+00> : vector<1x4xf32>
      %114 = tpu.matmul %112, %113, %cst_113 {dimension_numbers = #tpu.dot_dimension_numbers<[1], [0], [0], [1], [0, 0, 1, 1], [], []>} : vector<1x32xf32>, vector<32x4xf32>, vector<1x4xf32> -> vector<1x4xf32>
      %c44 = arith.constant 44 : index
      %c0_114 = arith.constant 0 : index
      %115 = vector.load %arg4[%c44, %c0_114] : memref<48x256xf32, #tpu.memory_space<vmem>>, vector<4x256xf32>
      %cst_115 = arith.constant dense<0.000000e+00> : vector<1x256xf32>
      %116 = tpu.matmul %114, %115, %cst_115 {dimension_numbers = #tpu.dot_dimension_numbers<[1], [0], [0], [1], [0, 0, 1, 1], [], []>} : vector<1x4xf32>, vector<4x256xf32>, vector<1x256xf32> -> vector<1x256xf32>
      %117 = arith.addf %109, %116 : vector<1x256xf32>
      %cst_116 = arith.constant 1.562500e-02 : f32
      %118 = vector.broadcast %cst_116 : f32 to vector<1x256xf32>
      %119 = arith.mulf %117, %118 : vector<1x256xf32>
      %c0_117 = arith.constant 0 : index
      %c0_118 = arith.constant 0 : index
      %120 = vector.load %arg5[%c0_117, %c0_118] : memref<1x256xf32, #tpu.memory_space<vmem>>, vector<1x256xf32>
      %121 = arith.addf %119, %120 : vector<1x256xf32>
      %122 = arith.truncf %121 : vector<1x256xf32> to vector<1x256xbf16>
      %c0_119 = arith.constant 0 : index
      %c0_120 = arith.constant 0 : index
      %123 = vector.load %arg6[%c0_119, %c0_120] : memref<256x128xbf16, #tpu.memory_space<vmem>>, vector<256x128xbf16>
      %cst_121 = arith.constant dense<0.000000e+00> : vector<1x128xf32>
      %124 = tpu.matmul %122, %123, %cst_121 {dimension_numbers = #tpu.dot_dimension_numbers<[1], [0], [0], [1], [0, 0, 1, 1], [], []>} : vector<1x256xbf16>, vector<256x128xbf16>, vector<1x128xf32> -> vector<1x128xf32>
      %c0_122 = arith.constant 0 : index
      %c0_123 = arith.constant 0 : index
      %125 = vector.load %arg7[%c0_122, %c0_123] : memref<1x128xf32, #tpu.memory_space<vmem>>, vector<1x128xf32>
      %126 = arith.addf %124, %125 : vector<1x128xf32>
      %127 = vector.shape_cast %126 : vector<1x128xf32> to vector<1x1x128xf32>
      %c0_124 = arith.constant 0 : index
      %c0_125 = arith.constant 0 : index
      %c0_126 = arith.constant 0 : index
      %128 = vector.load %arg8[%c0_124, %c0_125, %c0_126] : memref<1x1x128xf32, #tpu.memory_space<vmem>>, vector<1x1x128xf32>
      tpu.vector_store %arg8[%c0_124, %c0_125, %c0_126], %127 {strides = array<i32>} : memref<1x1x128xf32, #tpu.memory_space<vmem>>, vector<1x1x128xf32>,
    } else {
    }
    return
  }
  func.func @transform_0(%arg0: i32, %arg1: i32) -> (i32, i32, i32, i32) {
    %c0_i32 = arith.constant 0 : i32
    %c0_i32_0 = arith.constant 0 : i32
    %c0_i32_1 = arith.constant 0 : i32
    return %arg0, %c0_i32, %arg1, %c0_i32_0 : i32, i32, i32, i32
  }
  func.func @transform_1(%arg0: i32, %arg1: i32) -> (i32, i32) {
    %c0_i32 = arith.constant 0 : i32
    %c0_i32_0 = arith.constant 0 : i32
    %c0_i32_1 = arith.constant 0 : i32
    return %c0_i32, %c0_i32_0 : i32, i32
  }
  func.func @transform_2(%arg0: i32, %arg1: i32) -> (i32, i32) {
    %c0_i32 = arith.constant 0 : i32
    %c0_i32_0 = arith.constant 0 : i32
    %c0_i32_1 = arith.constant 0 : i32
    return %c0_i32, %c0_i32_0 : i32, i32
  }
  func.func @transform_3(%arg0: i32, %arg1: i32) -> (i32, i32) {
    %c0_i32 = arith.constant 0 : i32
    %c0_i32_0 = arith.constant 0 : i32
    %c0_i32_1 = arith.constant 0 : i32
    return %c0_i32, %c0_i32_0 : i32, i32
  }
  func.func @transform_4(%arg0: i32, %arg1: i32) -> (i32, i32) {
    %c0_i32 = arith.constant 0 : i32
    %c0_i32_0 = arith.constant 0 : i32
    %c0_i32_1 = arith.constant 0 : i32
    return %c0_i32, %c0_i32_0 : i32, i32
  }
  func.func @transform_5(%arg0: i32, %arg1: i32) -> (i32, i32) {
    %c0_i32 = arith.constant 0 : i32
    %c0_i32_0 = arith.constant 0 : i32
    %c0_i32_1 = arith.constant 0 : i32
    return %c0_i32, %c0_i32_0 : i32, i32
  }
  func.func @transform_6(%arg0: i32, %arg1: i32) -> (i32, i32, i32) {
    %c0_i32 = arith.constant 0 : i32
    %c0_i32_0 = arith.constant 0 : i32
    %c0_i32_1 = arith.constant 0 : i32
    return %arg0, %c0_i32, %c0_i32_0 : i32, i32, i32
  }
}

</mosaic_0001>

<llo_original>
// kernel: iris_rtdetr_vision_encoder_forward.1
$region0: #{iris_rtdetr_vision_encoder_forward.1}
  #allocation0 [shape = 'u32[]', space=smem, size = 0x4, offset = 0x4, fixed_abs, tag = 'smem constant byte address 0x4 - core index']
  #allocation1 [shape = 'u32[144,128]{1,0:T(1,128)}', space=vmem, size = 0x12000, scoped, tag = 'internal scratch']
  #allocation2 [shape = 'f32[24,32]{1,0:T(8,128)}', space=vmem, size = 0x3000, scoped, tag = 'scratch operand']
  %s0 = inlined_call_operand.vmem [shape: f32[2,3,32,32], index: 0, kind: input, shape index: {}]
  %s1 = inlined_call_operand.vmem [shape: f32[32,4], index: 1, kind: input, shape index: {}]
  %s2 = inlined_call_operand.vmem [shape: f32[48,256], index: 2, kind: input, shape index: {}]
  %s3 = inlined_call_operand.vmem [shape: f32[1,256], index: 3, kind: input, shape index: {}]
  %s4 = inlined_call_operand.vmem [shape: bf16[256,128], index: 4, kind: input, shape index: {}]
  %s5 = inlined_call_operand.vmem [shape: f32[1,128], index: 5, kind: input, shape index: {}]
  %s6 = inlined_call_operand.hbm [shape: f32[2,1,128], index: 6, kind: output, shape index: {}]
  %s7 = sld [smem:[#allocation0]]
  $region103: #{iris_rtdetr_vision_encoder_forward.1} parent=0
    _
  %s9 = ssub.s32 1, %s7
  %s10 = scalar_select 0, %s9, %s7
  $region1: #{iris_rtdetr_vision_encoder_forward.1} parent=0
    #allocation3 [shape = 'u8[24576]{0}', space=vmem, size = 0x6000, scoped, tag = 'input window, operand 0']
    #allocation4 [shape = 'u8[1024]{0}', space=vmem, size = 0x400, scoped, tag = 'output window, operand 0']
    #allocation5 [shape = 's32[2]{0}', space=sflag, size = 0x8, scoped, tag = 'scoped memory for iris_rtdetr_vision_encoder_forward.1']
    %11 = vsyncpa [#allocation5], 0
    %s12 = scalar_lea.sflag [#allocation5], 1
    %13 = vsyncpa %s12, 0
    loop: start=0, step=1, limit=10
    $region2: #{iris_rtdetr_vision_encoder_forward.1} parent=1 // loop_pre_header
      _
    $region3: #{iris_rtdetr_vision_encoder_forward.1} parent=1 // loop_header
      %s15 = sphi 0, %s19
      %p16 = scmp.ge.s32.totalorder %s15, 10
      %s22 = sphi 0, %s34
      %s23 = sphi 0, %s30
      %s24 = sphi 0, %s22
      %s25 = sphi 0, %s23
      %s26 = sphi 0, %s24
      %s27 = sphi 0, %s25
      %s39 = sphi 0, %s41
      %s42 = sphi 0, %s39
      %s43 = sphi 0, %s42
      %s59 = sphi 0, %s43
      %s63 = sphi 0, %s63
      %s65 = sphi 0, %s63
      %s66 = sphi 0, %s65
      %s80 = sphi 0, %s66
      %s84 = sphi 0, %s84
      %s86 = sphi 0, %s84
      %s87 = sphi 0, %s86
      %s101 = sphi 0, %s87
      %s105 = sphi 0, %s105
      %s107 = sphi 0, %s105
      %s108 = sphi 0, %s107
      %s122 = sphi 0, %s108
      %s126 = sphi 0, %s126
      %s128 = sphi 0, %s126
      %s129 = sphi 0, %s128
      %s143 = sphi 0, %s129
      %s147 = sphi 0, %s147
      %s149 = sphi 0, %s147
      %s150 = sphi 0, %s149
      %s164 = sphi 0, %s150
      %s170 = sphi 0, %s172
      %s173 = sphi 0, %s170
      %s174 = sphi 0, %s173
      %s190 = sphi 0, %s174
    $region4: #{iris_rtdetr_vision_encoder_forward.1} parent=1 // loop_header_branch
      %18 = sbr.rel (%p16) target = $region8
    $region5: #{iris_rtdetr_vision_encoder_forward.1} parent=1 // loop_body
      %s20 = ssub.s32 %s15, 1
      %s21 = ssub.s32 %s15, 2
      %s28 = sadd.s32 1, %s23
      %p29 = scmp.ge.s32.totalorder %s28, 4
      %s30 = scalar_select %p29, 0, %s28
      %s31 = sadd.s32 1, %s22
      %s32 = scalar_select %p29, %s31, %s22
      %p33 = scmp.ge.s32.totalorder %s32, 2
      %s34 = scalar_select %p33, 0, %s32
      %s35 = ssub.s32 %s22, %s34
      %s36 = ssub.s32 %s23, %s30
      %s37 = sor.u32 %s35, %s36
      %p38 = scmp.eq.s32.totalorder %s37, 0
      %s40 = sadd.s32 %s39, 1
      %s41 = scalar_select %p38, %s39, %s40
      %p44 = pneg %p38
      %p45 = scmp.eq.s32.totalorder %s15, 7
      %p46 = por %p44, %p45
      %p47 = scmp.ne.s32.totalorder %s39, %s42
      %p48 = scmp.eq.s32.totalorder %s15, 0
      %p49 = por %p47, %p48
      %p50 = scmp.ne.s32.totalorder %s39, %s42
      %p51 = scmp.eq.s32.totalorder %s20, 7
      %p52 = por %p50, %p51
      %p53 = scmp.ne.s32.totalorder %s42, %s43
      %p54 = scmp.eq.s32.totalorder %s20, 0
      %p55 = por %p53, %p54
      %p56 = scmp.ne.s32.totalorder %s42, %s43
      %p57 = scmp.eq.s32.totalorder %s21, 7
      %p58 = por %p56, %p57
      %p60 = scmp.ne.s32.totalorder %s43, %s59
      %p61 = scmp.eq.s32.totalorder %s21, 0
      %p62 = por %p60, %p61
      %s64 = sadd.s32 %s63, 1
      %p67 = scmp.eq.s32.totalorder %s15, 7
      %p68 = scmp.ne.s32.totalorder %s63, %s65
      %p69 = scmp.eq.s32.totalorder %s15, 0
      %p70 = por %p68, %p69
      %p71 = scmp.ne.s32.totalorder %s63, %s65
      %p72 = scmp.eq.s32.totalorder %s20, 7
      %p73 = por %p71, %p72
      %p74 = scmp.ne.s32.totalorder %s65, %s66
      %p75 = scmp.eq.s32.totalorder %s20, 0
      %p76 = por %p74, %p75
      %p77 = scmp.ne.s32.totalorder %s65, %s66
      %p78 = scmp.eq.s32.totalorder %s21, 7
      %p79 = por %p77, %p78
      %p81 = scmp.ne.s32.totalorder %s66, %s80
      %p82 = scmp.eq.s32.totalorder %s21, 0
      %p83 = por %p81, %p82
      %s85 = sadd.s32 %s84, 1
      %p88 = scmp.eq.s32.totalorder %s15, 7
      %p89 = scmp.ne.s32.totalorder %s84, %s86
      %p90 = scmp.eq.s32.totalorder %s15, 0
      %p91 = por %p89, %p90
      %p92 = scmp.ne.s32.totalorder %s84, %s86
      %p93 = scmp.eq.s32.totalorder %s20, 7
      %p94 = por %p92, %p93
      %p95 = scmp.ne.s32.totalorder %s86, %s87
      %p96 = scmp.eq.s32.totalorder %s20, 0
      %p97 = por %p95, %p96
      %p98 = scmp.ne.s32.totalorder %s86, %s87
      %p99 = scmp.eq.s32.totalorder %s21, 7
      %p100 = por %p98, %p99
      %p102 = scmp.ne.s32.totalorder %s87, %s101
      %p103 = scmp.eq.s32.totalorder %s21, 0
      %p104 = por %p102, %p103
      %s106 = sadd.s32 %s105, 1
      %p109 = scmp.eq.s32.totalorder %s15, 7
      %p110 = scmp.ne.s32.totalorder %s105, %s107
      %p111 = scmp.eq.s32.totalorder %s15, 0
      %p112 = por %p110, %p111
      %p113 = scmp.ne.s32.totalorder %s105, %s107
      %p114 = scmp.eq.s32.totalorder %s20, 7
      %p115 = por %p113, %p114
      %p116 = scmp.ne.s32.totalorder %s107, %s108
      %p117 = scmp.eq.s32.totalorder %s20, 0
      %p118 = por %p116, %p117
      %p119 = scmp.ne.s32.totalorder %s107, %s108
      %p120 = scmp.eq.s32.totalorder %s21, 7
      %p121 = por %p119, %p120
      %p123 = scmp.ne.s32.totalorder %s108, %s122
      %p124 = scmp.eq.s32.totalorder %s21, 0
      %p125 = por %p123, %p124
      %s127 = sadd.s32 %s126, 1
      %p130 = scmp.eq.s32.totalorder %s15, 7
      %p131 = scmp.ne.s32.totalorder %s126, %s128
      %p132 = scmp.eq.s32.totalorder %s15, 0
      %p133 = por %p131, %p132
      %p134 = scmp.ne.s32.totalorder %s126, %s128
      %p135 = scmp.eq.s32.totalorder %s20, 7
      %p136 = por %p134, %p135
      %p137 = scmp.ne.s32.totalorder %s128, %s129
      %p138 = scmp.eq.s32.totalorder %s20, 0
      %p139 = por %p137, %p138
      %p140 = scmp.ne.s32.totalorder %s128, %s129
      %p141 = scmp.eq.s32.totalorder %s21, 7
      %p142 = por %p140, %p141
      %p144 = scmp.ne.s32.totalorder %s129, %s143
      %p145 = scmp.eq.s32.totalorder %s21, 0
      %p146 = por %p144, %p145
      %s148 = sadd.s32 %s147, 1
      %p151 = scmp.eq.s32.totalorder %s15, 7
      %p152 = scmp.ne.s32.totalorder %s147, %s149
      %p153 = scmp.eq.s32.totalorder %s15, 0
      %p154 = por %p152, %p153
      %p155 = scmp.ne.s32.totalorder %s147, %s149
      %p156 = scmp.eq.s32.totalorder %s20, 7
      %p157 = por %p155, %p156
      %p158 = scmp.ne.s32.totalorder %s149, %s150
      %p159 = scmp.eq.s32.totalorder %s20, 0
      %p160 = por %p158, %p159
      %p161 = scmp.ne.s32.totalorder %s149, %s150
      %p162 = scmp.eq.s32.totalorder %s21, 7
      %p163 = por %p161, %p162
      %p165 = scmp.ne.s32.totalorder %s150, %s164
      %p166 = scmp.eq.s32.totalorder %s21, 0
      %p167 = por %p165, %p166
      %s168 = ssub.s32 %s22, %s34
      %p169 = scmp.eq.s32.totalorder %s168, 0
      %s171 = sadd.s32 %s170, 1
      %s172 = scalar_select %p169, %s170, %s171
      %p175 = pneg %p169
      %p176 = scmp.eq.s32.totalorder %s15, 7
      %p177 = por %p175, %p176
      %p178 = scmp.ne.s32.totalorder %s170, %s173
      %p179 = scmp.eq.s32.totalorder %s15, 0
      %p180 = por %p178, %p179
      %p181 = scmp.ne.s32.totalorder %s170, %s173
      %p182 = scmp.eq.s32.totalorder %s20, 7
      %p183 = por %p181, %p182
      %p184 = scmp.ne.s32.totalorder %s173, %s174
      %p185 = scmp.eq.s32.totalorder %s20, 0
      %p186 = por %p184, %p185
      %p187 = scmp.ne.s32.totalorder %s173, %s174
      %p188 = scmp.eq.s32.totalorder %s21, 7
      %p189 = por %p187, %p188
      %p191 = scmp.ne.s32.totalorder %s174, %s190
      %p192 = scmp.eq.s32.totalorder %s21, 0
      %p193 = por %p191, %p192
      %p194 = scmp.le.s32.totalorder 1, %s15
      %p195 = scmp.lt.s32.totalorder %s15, 9
      %p196 = pnand %p194, %p195
      %p197 = pneg %p196
      // Predicated region
      $region9: #{iris_rtdetr_vision_encoder_forward.1} parent=5 // pred_check
        _
      $region10: #{iris_rtdetr_vision_encoder_forward.1} parent=5 // pred_check_branch
        %199 = sbr.rel (%p196) target = $region12
      $region11: #{iris_rtdetr_vision_encoder_forward.1} parent=5 // pred_region
        %s200 = ssub.s32 %s15, 1
        // Predicated region
        $region13: #{iris_rtdetr_vision_encoder_forward.1} parent=11 // pred_check
          %p201 = pneg %p76
        $region14: #{iris_rtdetr_vision_encoder_forward.1} parent=11 // pred_check_branch
          %203 = sbr.rel (%p201) target = $region16
        $region15: #{iris_rtdetr_vision_encoder_forward.1} parent=11 // pred_region
          _
        $region16: #{iris_rtdetr_vision_encoder_forward.1} parent=11 // pred_fallthru
          _
        // Predicated region
        $region17: #{iris_rtdetr_vision_encoder_forward.1} parent=11 // pred_check
          %p204 = pneg %p97
        $region18: #{iris_rtdetr_vision_encoder_forward.1} parent=11 // pred_check_branch
          %206 = sbr.rel (%p204) target = $region20
        $region19: #{iris_rtdetr_vision_encoder_forward.1} parent=11 // pred_region
          _
        $region20: #{iris_rtdetr_vision_encoder_forward.1} parent=11 // pred_fallthru
          _
        // Predicated region
        $region21: #{iris_rtdetr_vision_encoder_forward.1} parent=11 // pred_check
          %p207 = pneg %p118
        $region22: #{iris_rtdetr_vision_encoder_forward.1} parent=11 // pred_check_branch
          %209 = sbr.rel (%p207) target = $region24
        $region23: #{iris_rtdetr_vision_encoder_forward.1} parent=11 // pred_region
          _
        $region24: #{iris_rtdetr_vision_encoder_forward.1} parent=11 // pred_fallthru
          _
        // Predicated region
        $region25: #{iris_rtdetr_vision_encoder_forward.1} parent=11 // pred_check
          %p210 = pneg %p139
        $region26: #{iris_rtdetr_vision_encoder_forward.1} parent=11 // pred_check_branch
          %212 = sbr.rel (%p210) target = $region28
        $region27: #{iris_rtdetr_vision_encoder_forward.1} parent=11 // pred_region
          _
        $region28: #{iris_rtdetr_vision_encoder_forward.1} parent=11 // pred_fallthru
          _
        // Predicated region
        $region29: #{iris_rtdetr_vision_encoder_forward.1} parent=11 // pred_check
          %p213 = pneg %p160
        $region30: #{iris_rtdetr_vision_encoder_forward.1} parent=11 // pred_check_branch
          %215 = sbr.rel (%p213) target = $region32
        $region31: #{iris_rtdetr_vision_encoder_forward.1} parent=11 // pred_region
          _
        $region32: #{iris_rtdetr_vision_encoder_forward.1} parent=11 // pred_fallthru
          _
      $region12: #{iris_rtdetr_vision_encoder_forward.1} parent=5 // pred_fallthru
        _
      %p216 = scmp.lt.s32.totalorder %s15, 8
      // Predicated region
      $region33: #{iris_rtdetr_vision_encoder_forward.1} parent=5 // pred_check
        %p217 = pneg %p216
      $region34: #{iris_rtdetr_vision_encoder_forward.1} parent=5 // pred_check_branch
        %219 = sbr.rel (%p217) target = $region36
      $region35: #{iris_rtdetr_vision_encoder_forward.1} parent=5 // pred_region
        // Predicated region
        $region37: #{iris_rtdetr_vision_encoder_forward.1} parent=35 // pred_check
          %p220 = pneg %p49
        $region38: #{iris_rtdetr_vision_encoder_forward.1} parent=35 // pred_check_branch
          %222 = sbr.rel (%p220) target = $region40
        $region39: #{iris_rtdetr_vision_encoder_forward.1} parent=35 // pred_region
          %s223 = sand.u32 %s39, 1
          %s224 = sand.u32 %s39, 1
          %s225 = smul.addr %s224, 24
          %s226 = scalar_lea.vmem [#allocation3], %s225
          %s227 = smul.addr %s22, 12
          %s228 = sadd.s32 %s23, %s227
          %s229 = smul.addr %s228, 8
          %s230 = scalar_lea.vmem %s0, %s229
          // Predicated region
          $region41: #{iris_rtdetr_vision_encoder_forward.1} parent=39 // pred_check
            _
          $region42: #{iris_rtdetr_vision_encoder_forward.1} parent=39 // pred_check_branch
            %232 = sbr.rel (0) target = $region44
          $region43: #{iris_rtdetr_vision_encoder_forward.1} parent=39 // pred_region
            // Predicated region
            $region45: #{iris_rtdetr_vision_encoder_forward.1} parent=43 // pred_check
              _
            $region46: #{iris_rtdetr_vision_encoder_forward.1} parent=43 // pred_check_branch
              %234 = sbr.rel (0) target = $region48
            $region47: #{iris_rtdetr_vision_encoder_forward.1} parent=43 // pred_region
              // Predicated region
              $region60: #{iris_rtdetr_vision_encoder_forward.1} parent=47 // pred_check
                _
              $region61: #{iris_rtdetr_vision_encoder_forward.1} parent=47 // pred_check_branch
                %253 = sbr.rel (0) target = $region63
              $region62: #{iris_rtdetr_vision_encoder_forward.1} parent=47 // pred_region
                loop: start=0, step=1, limit=1
                $region64: #{iris_rtdetr_vision_encoder_forward.1} parent=62 // loop_pre_header
                  _
                $region65: #{iris_rtdetr_vision_encoder_forward.1} parent=62 // loop_header
                  %s255 = sphi 0, %s259
                  %p256 = scmp.ge.s32.totalorder %s255, 1
                  %s260 = sphi %s230, %s230
                  %s261 = sphi %s226, %s226
                $region66: #{iris_rtdetr_vision_encoder_forward.1} parent=62 // loop_header_branch
                  %258 = sbr.rel (%p256) target = $region70
                $region67: #{iris_rtdetr_vision_encoder_forward.1} parent=62 // loop_body
                  %v262 = vld [vmem:[%s260] sm:$0xff]
                  %263 = vst [vmem:[%s261] sm:$0xff] %v262
                  %v264 = vld [vmem:[%s260 + $0x20] sm:$0xff]
                  %265 = vst [vmem:[%s261 + $0x8] sm:$0xff] %v264
                  %v266 = vld [vmem:[%s260 + $0x40] sm:$0xff]
                  %267 = vst [vmem:[%s261 + $0x10] sm:$0xff] %v266
                $region68: #{iris_rtdetr_vision_encoder_forward.1} parent=62 // loop_footer
                  %s259 = sadd.s32 1, %s255
                $region69: #{iris_rtdetr_vision_encoder_forward.1} parent=62 // loop_footer_branch
                  %254 = sbr.rel target = $region65
                $region70: #{iris_rtdetr_vision_encoder_forward.1} parent=62 // loop_exit
                  _
              $region63: #{iris_rtdetr_vision_encoder_forward.1} parent=47 // pred_fallthru
                _
              // Predicated region
              $region71: #{iris_rtdetr_vision_encoder_forward.1} parent=47 // pred_check
                _
              $region72: #{iris_rtdetr_vision_encoder_forward.1} parent=47 // pred_check_branch
                %269 = sbr.rel target = $region74
              $region73: #{iris_rtdetr_vision_encoder_forward.1} parent=47 // pred_region
                _
              $region74: #{iris_rtdetr_vision_encoder_forward.1} parent=47 // pred_fallthru
                _
            $region48: #{iris_rtdetr_vision_encoder_forward.1} parent=43 // pred_fallthru
              _
            // Predicated region
            $region49: #{iris_rtdetr_vision_encoder_forward.1} parent=43 // pred_check
              _
            $region50: #{iris_rtdetr_vision_encoder_forward.1} parent=43 // pred_check_branch
              %236 = sbr.rel target = $region52
            $region51: #{iris_rtdetr_vision_encoder_forward.1} parent=43 // pred_region
              loop: start=0, step=1, limit=1
              $region53: #{iris_rtdetr_vision_encoder_forward.1} parent=51 // loop_pre_header
                _
              $region54: #{iris_rtdetr_vision_encoder_forward.1} parent=51 // loop_header
                %s239 = sphi 0, %s243
                %p240 = scmp.ge.s32.totalorder %s239, 1
                %s244 = sphi %s230, %s230
                %s245 = sphi %s226, %s226
              $region55: #{iris_rtdetr_vision_encoder_forward.1} parent=51 // loop_header_branch
                %242 = sbr.rel (%p240) target = $region59
              $region56: #{iris_rtdetr_vision_encoder_forward.1} parent=51 // loop_body
                %v246 = vld [vmem:[%s244] sm:$0xff]
                %247 = vst [vmem:[%s245] sm:$0xff] %v246
                %v248 = vld [vmem:[%s244 + $0x20] sm:$0xff]
                %249 = vst [vmem:[%s245 + $0x8] sm:$0xff] %v248
                %v250 = vld [vmem:[%s244 + $0x40] sm:$0xff]
                %251 = vst [vmem:[%s245 + $0x10] sm:$0xff] %v250
              $region57: #{iris_rtdetr_vision_encoder_forward.1} parent=51 // loop_footer
                %s243 = sadd.s32 1, %s239
              $region58: #{iris_rtdetr_vision_encoder_forward.1} parent=51 // loop_footer_branch
                %238 = sbr.rel target = $region54
              $region59: #{iris_rtdetr_vision_encoder_forward.1} parent=51 // loop_exit
                _
            $region52: #{iris_rtdetr_vision_encoder_forward.1} parent=43 // pred_fallthru
              _
          $region44: #{iris_rtdetr_vision_encoder_forward.1} parent=39 // pred_fallthru
            _
          %270 = vnop
        $region40: #{iris_rtdetr_vision_encoder_forward.1} parent=35 // pred_fallthru
          _
      $region36: #{iris_rtdetr_vision_encoder_forward.1} parent=5 // pred_fallthru
        _
      %p271 = scmp.le.s32.totalorder 1, %s15
      %p272 = scmp.lt.s32.totalorder %s15, 9
      %p273 = pnand %p271, %p272
      %p274 = pneg %p273
      // Predicated region
      $region75: #{iris_rtdetr_vision_encoder_forward.1} parent=5 // pred_check
        _
      $region76: #{iris_rtdetr_vision_encoder_forward.1} parent=5 // pred_check_branch
        %276 = sbr.rel (%p273) target = $region78
      $region77: #{iris_rtdetr_vision_encoder_forward.1} parent=5 // pred_region
        %s277 = ssub.s32 %s15, 1
        %s278 = sand.u32 %s42, 1
        %s279 = sand.u32 %s42, 1
        %s280 = smul.addr %s279, 24
        %s281 = scalar_lea.vmem [#allocation3], %s280
        // Predicated region
        $region79: #{iris_rtdetr_vision_encoder_forward.1} parent=77 // pred_check
          %p282 = pneg %p55
        $region80: #{iris_rtdetr_vision_encoder_forward.1} parent=77 // pred_check_branch
          %284 = sbr.rel (%p282) target = $region82
        $region81: #{iris_rtdetr_vision_encoder_forward.1} parent=77 // pred_region
          _
        $region82: #{iris_rtdetr_vision_encoder_forward.1} parent=77 // pred_fallthru
          _
        %s285 = sand.u32 %s42, 1
        %s286 = sand.u32 %s42, 1
        %s287 = smul.addr %s286, 24
        %s288 = scalar_lea.vmem [#allocation3], %s287
        %p289 = pneg %p55
        %p290 = pneg %p52
        %p291 = pneg %p76
        %p292 = pneg %p73
        %p293 = pneg %p97
        %p294 = pneg %p94
        %p295 = pneg %p118
        %p296 = pneg %p115
        %p297 = pneg %p139
        %p298 = pneg %p136
        %p299 = pneg %p160
        %p300 = pneg %p157
        %p301 = pneg %p186
        %p302 = pneg %p183
        %s303 = sand.u32 %s173, 1
        %s304 = scalar_lea.sflag [#allocation5], %s303
        %s305 = sand.u32 %s173, 1
        %s306 = scalar_lea.vmem [#allocation4], %s305
        %p308 = scmp.eq.s32.totalorder %s25, 0
        // Predicated region
        $region83: #{iris_rtdetr_vision_encoder_forward.1} parent=77 // pred_check
          %p309 = pneg %p308
        $region84: #{iris_rtdetr_vision_encoder_forward.1} parent=77 // pred_check_branch
          %311 = sbr.rel (%p309) target = $region86
        $region85: #{iris_rtdetr_vision_encoder_forward.1} parent=77 // pred_region
          %vm312 = vcmask 261120
          %313 = vst.msk [vmem:[#allocation2] sm:$0xff] %vm312, 0.0
          %314 = vst.msk [vmem:[#allocation2 + $0x8] sm:$0xff] %vm312, 0.0
          %315 = vst.msk [vmem:[#allocation2 + $0x10] sm:$0xff] %vm312, 0.0
        $region86: #{iris_rtdetr_vision_encoder_forward.1} parent=77 // pred_fallthru
          _
        %v316 = vld [vmem:[%s281] sm:$0xff]
        %v317 = vld [vmem:[#allocation2] sm:$0xff]
        %v318 = vadd.f32 %v317, %v316
        %vm319 = vcmask 261120
        %320 = vst.msk [vmem:[#allocation2] sm:$0xff] %vm319, %v318
        %s321 = scalar_lea.vmem %s281, 8 [#allocation3]
        %v322 = vld [vmem:[%s321] sm:$0xff]
        %v323 = vld [vmem:[#allocation2 + $0x8] sm:$0xff]
        %v324 = vadd.f32 %v323, %v322
        %325 = vst.msk [vmem:[#allocation2 + $0x8] sm:$0xff] %vm319, %v324
        %s326 = scalar_lea.vmem %s281, 16 [#allocation3]
        %v327 = vld [vmem:[%s326] sm:$0xff]
        %v328 = vld [vmem:[#allocation2 + $0x10] sm:$0xff]
        %v329 = vadd.f32 %v328, %v327
        %330 = vst.msk [vmem:[#allocation2 + $0x10] sm:$0xff] %vm319, %v329
        %p331 = scmp.eq.s32.totalorder %s25, 3
        // Predicated region
        $region87: #{iris_rtdetr_vision_encoder_forward.1} parent=77 // pred_check
          %p332 = pneg %p331
        $region88: #{iris_rtdetr_vision_encoder_forward.1} parent=77 // pred_check_branch
          %334 = sbr.rel (%p332) target = $region90
        $region89: #{iris_rtdetr_vision_encoder_forward.1} parent=77 // pred_region
          %v335 = vld [vmem:[#allocation2] sm:$0x1]
          %v336 = vld [vmem:[#allocation2 + $0x4] sm:$0x1]
          %v337 = vadd.f32 %v335, %v336
          %v338 = vld [vmem:[%s1] sm:$0xff]
          %v339 = vld [vmem:[%s1 + $0x8] sm:$0xff]
          %v340 = vld [vmem:[%s1 + $0x10] sm:$0xff]
          %v341 = vld [vmem:[%s1 + $0x18] sm:$0xff]
          %v343 = vsel %vm319, %v337, 0
          %345 = vmatprep.subr.mxu0 0.0
          %346 = vmatpush1.msra.mxu0 %v338
          %347 = vmatprep.subr.mxu0 0.0
          %348 = vmatpush1.msra.mxu0 %v339
          %349 = vmatprep.subr.mxu0 0.0
          %350 = vmatpush1.msra.mxu0 %v340
          %351 = vmatprep.subr.mxu0 0.0
          %352 = vmatpush1.msra.mxu0 %v341
          %353 = vmatprep.subr.mxu0 0.0
          %354 = vmatpush1.msra.mxu0 0.0
          %355 = vmatprep.subr.mxu0 0.0
          %356 = vmatpush1.msra.mxu0 0.0
          %357 = vmatprep.subr.mxu0 0.0
          %358 = vmatpush1.msra.mxu0 0.0
          %359 = vmatprep.subr.mxu0 0.0
          %360 = vmatpush1.msra.mxu0 0.0
          %361 = vmatprep.subr.mxu0 0.0
          %362 = vmatpush1.msra.mxu0 0.0
          %363 = vmatprep.subr.mxu0 0.0
          %364 = vmatpush1.msra.mxu0 0.0
          %365 = vmatprep.subr.mxu0 0.0
          %366 = vmatpush1.msra.mxu0 0.0
          %367 = vmatprep.subr.mxu0 0.0
          %368 = vmatpush1.msra.mxu0 0.0
          %369 = vmatprep.subr.mxu0 0.0
          %370 = vmatpush1.msra.mxu0 0.0
          %371 = vmatprep.subr.mxu0 0.0
          %372 = vmatpush1.msra.mxu0 0.0
          %373 = vmatprep.subr.mxu0 0.0
          %374 = vmatpush1.msra.mxu0 0.0
          %375 = vmatprep.subr.mxu0 0.0
          %376 = vmatpush1.msra.mxu0 0.0
          %377 = vmatprep.subr.mxu0 0.0
          %378 = vmatpush1.msra.mxu0 0.0
          %379 = vmatprep.subr.mxu0 0.0
          %380 = vmatpush1.msra.mxu0 0.0
          %381 = vmatprep.subr.mxu0 0.0
          %382 = vmatpush1.msra.mxu0 0.0
          %383 = vmatprep.subr.mxu0 0.0
          %384 = vmatpush1.msra.mxu0 0.0
          %385 = vmatprep.subr.mxu0 0.0
          %386 = vmatpush1.msra.mxu0 0.0
          %387 = vmatprep.subr.mxu0 0.0
          %388 = vmatpush1.msra.mxu0 0.0
          %389 = vmatprep.subr.mxu0 0.0
          %390 = vmatpush1.msra.mxu0 0.0
          %391 = vmatprep.subr.mxu0 0.0
          %392 = vmatpush1.msra.mxu0 0.0
          %393 = vmatprep.subr.mxu0 0.0
          %394 = vmatpush1.msra.mxu0 0.0
          %395 = vmatprep.subr.mxu0 0.0
          %396 = vmatpush1.msra.mxu0 0.0
          %397 = vmatprep.subr.mxu0 0.0
          %398 = vmatpush1.msra.mxu0 0.0
          %399 = vmatprep.subr.mxu0 0.0
          %400 = vmatpush1.msra.mxu0 0.0
          %401 = vmatprep.subr.mxu0 0.0
          %402 = vmatpush1.msra.mxu0 0.0
          %403 = vmatprep.subr.mxu0 0.0
          %404 = vmatpush1.msra.mxu0 0.0
          %405 = vmatprep.subr.mxu0 0.0
          %406 = vmatpush1.msra.mxu0 0.0
          %407 = vmatprep.subr.mxu0 0.0
          %408 = vmatpush1.msra.mxu0 0.0
          %409 = vmatprep.mubr.f32.mxu0 0.0
          %410 = vmatmul.mubr.f32.gmra.mrb[0].mxu0 %v343
          %v411 = vpop.f32.mrb[0].mxu0
          %v412 = vadd.f32 0.0, %v411
          %v413 = vpop.f32.mrb[0].mxu0
          %414 = vdwg.mxu0
          %v415 = vld [vmem:[%s2] sm:$0xf]
          %v416 = vld [vmem:[%s2 + $0x8] sm:$0xf]
          %v417 = vld [vmem:[#allocation2 + $0x1] sm:$0x1]
          %v418 = vld [vmem:[#allocation2 + $0x5] sm:$0x1]
          %v419 = vadd.f32 %v417, %v418
          %v421 = vsel %vm319, %v419, 0
          %423 = vmatprep.subr.mxu0 0.0
          %424 = vmatpush1.msra.mxu0 %v338
          %425 = vmatprep.subr.mxu0 0.0
          %426 = vmatpush1.msra.mxu0 %v339
          %427 = vmatprep.subr.mxu0 0.0
          %428 = vmatpush1.msra.mxu0 %v340
          %429 = vmatprep.subr.mxu0 0.0
          %430 = vmatpush1.msra.mxu0 %v341
          %431 = vmatprep.subr.mxu0 0.0
          %432 = vmatpush1.msra.mxu0 0.0
          %433 = vmatprep.subr.mxu0 0.0
          %434 = vmatpush1.msra.mxu0 0.0
          %435 = vmatprep.subr.mxu0 0.0
          %436 = vmatpush1.msra.mxu0 0.0
          %437 = vmatprep.subr.mxu0 0.0
          %438 = vmatpush1.msra.mxu0 0.0
          %439 = vmatprep.subr.mxu0 0.0
          %440 = vmatpush1.msra.mxu0 0.0
          %441 = vmatprep.subr.mxu0 0.0
          %442 = vmatpush1.msra.mxu0 0.0
          %443 = vmatprep.subr.mxu0 0.0
          %444 = vmatpush1.msra.mxu0 0.0
          %445 = vmatprep.subr.mxu0 0.0
          %446 = vmatpush1.msra.mxu0 0.0
          %447 = vmatprep.subr.mxu0 0.0
          %448 = vmatpush1.msra.mxu0 0.0
          %449 = vmatprep.subr.mxu0 0.0
          %450 = vmatpush1.msra.mxu0 0.0
          %451 = vmatprep.subr.mxu0 0.0
          %452 = vmatpush1.msra.mxu0 0.0
          %453 = vmatprep.subr.mxu0 0.0
          %454 = vmatpush1.msra.mxu0 0.0
          %455 = vmatprep.subr.mxu0 0.0
          %456 = vmatpush1.msra.mxu0 0.0
          %457 = vmatprep.subr.mxu0 0.0
          %458 = vmatpush1.msra.mxu0 0.0
          %459 = vmatprep.subr.mxu0 0.0
          %460 = vmatpush1.msra.mxu0 0.0
          %461 = vmatprep.subr.mxu0 0.0
          %462 = vmatpush1.msra.mxu0 0.0
          %463 = vmatprep.subr.mxu0 0.0
          %464 = vmatpush1.msra.mxu0 0.0
          %465 = vmatprep.subr.mxu0 0.0
          %466 = vmatpush1.msra.mxu0 0.0
          %467 = vmatprep.subr.mxu0 0.0
          %468 = vmatpush1.msra.mxu0 0.0
          %469 = vmatprep.subr.mxu0 0.0
          %470 = vmatpush1.msra.mxu0 0.0
          %471 = vmatprep.subr.mxu0 0.0
          %472 = vmatpush1.msra.mxu0 0.0
          %473 = vmatprep.subr.mxu0 0.0
          %474 = vmatpush1.msra.mxu0 0.0
          %475 = vmatprep.subr.mxu0 0.0
          %476 = vmatpush1.msra.mxu0 0.0
          %477 = vmatprep.subr.mxu0 0.0
          %478 = vmatpush1.msra.mxu0 0.0
          %479 = vmatprep.subr.mxu0 0.0
          %480 = vmatpush1.msra.mxu0 0.0
          %481 = vmatprep.subr.mxu0 0.0
          %482 = vmatpush1.msra.mxu0 0.0
          %483 = vmatprep.subr.mxu0 0.0
          %484 = vmatpush1.msra.mxu0 0.0
          %485 = vmatprep.subr.mxu0 0.0
          %486 = vmatpush1.msra.mxu0 0.0
          %487 = vmatprep.mubr.f32.mxu0 0.0
          %488 = vmatmul.mubr.f32.gmra.mrb[0].mxu0 %v421
          %v489 = vpop.f32.mrb[0].mxu0
          %v490 = vadd.f32 0.0, %v489
          %v491 = vpop.f32.mrb[0].mxu0
          %492 = vdwg.mxu0
          %v493 = vld [vmem:[%s2] sm:$0xf0]
          %v494 = vld [vmem:[%s2 + $0x8] sm:$0xf0]
          %v497 = vrot.slane %v493, 4
          %v498 = vrot.slane %v494, 4
          %vm499 = vcmask 31744
          %v501 = vsel %vm499, %v490, 0
          %vm503 = vcmask 1043456
          %v504 = vsel %vm503, %v497, 0
          %v506 = vsel %vm503, %v498, 0
          %508 = vmatprep.subr.mxu0 %v506
          %509 = vmatpush1.msra.mxu0 %v504
          %510 = vmatprep.subr.mxu0 0.0
          %511 = vmatpush1.msra.mxu0 0.0
          %512 = vmatprep.subr.mxu0 0.0
          %513 = vmatpush1.msra.mxu0 0.0
          %514 = vmatprep.subr.mxu0 0.0
          %515 = vmatpush1.msra.mxu0 0.0
          %516 = vmatprep.subr.mxu0 0.0
          %517 = vmatpush1.msra.mxu0 0.0
          %518 = vmatprep.subr.mxu0 0.0
          %519 = vmatpush1.msra.mxu0 0.0
          %520 = vmatprep.subr.mxu0 0.0
          %521 = vmatpush1.msra.mxu0 0.0
          %522 = vmatprep.subr.mxu0 0.0
          %523 = vmatpush1.msra.mxu0 0.0
          %524 = vmatprep.subr.mxu0 0.0
          %525 = vmatpush1.msra.mxu0 0.0
          %526 = vmatprep.subr.mxu0 0.0
          %527 = vmatpush1.msra.mxu0 0.0
          %528 = vmatprep.subr.mxu0 0.0
          %529 = vmatpush1.msra.mxu0 0.0
          %530 = vmatprep.subr.mxu0 0.0
          %531 = vmatpush1.msra.mxu0 0.0
          %532 = vmatprep.subr.mxu0 0.0
          %533 = vmatpush1.msra.mxu0 0.0
          %534 = vmatprep.subr.mxu0 0.0
          %535 = vmatpush1.msra.mxu0 0.0
          %536 = vmatprep.subr.mxu0 0.0
          %537 = vmatpush1.msra.mxu0 0.0
          %538 = vmatprep.subr.mxu0 0.0
          %539 = vmatpush1.msra.mxu0 0.0
          %540 = vmatprep.subr.mxu0 0.0
          %541 = vmatpush1.msra.mxu0 0.0
          %542 = vmatprep.subr.mxu0 0.0
          %543 = vmatpush1.msra.mxu0 0.0
          %544 = vmatprep.subr.mxu0 0.0
          %545 = vmatpush1.msra.mxu0 0.0
          %546 = vmatprep.subr.mxu0 0.0
          %547 = vmatpush1.msra.mxu0 0.0
          %548 = vmatprep.subr.mxu0 0.0
          %549 = vmatpush1.msra.mxu0 0.0
          %550 = vmatprep.subr.mxu0 0.0
          %551 = vmatpush1.msra.mxu0 0.0
          %552 = vmatprep.subr.mxu0 0.0
          %553 = vmatpush1.msra.mxu0 0.0
          %554 = vmatprep.subr.mxu0 0.0
          %555 = vmatpush1.msra.mxu0 0.0
          %556 = vmatprep.subr.mxu0 0.0
          %557 = vmatpush1.msra.mxu0 0.0
          %558 = vmatprep.subr.mxu0 0.0
          %559 = vmatpush1.msra.mxu0 0.0
          %560 = vmatprep.subr.mxu0 0.0
          %561 = vmatpush1.msra.mxu0 0.0
          %562 = vmatprep.subr.mxu0 0.0
          %563 = vmatpush1.msra.mxu0 0.0
          %564 = vmatprep.subr.mxu0 0.0
          %565 = vmatpush1.msra.mxu0 0.0
          %566 = vmatprep.subr.mxu0 0.0
          %567 = vmatpush1.msra.mxu0 0.0
          %568 = vmatprep.subr.mxu0 0.0
          %569 = vmatpush1.msra.mxu0 0.0
          %570 = vmatprep.subr.mxu0 0.0
          %571 = vmatpush1.msra.mxu0 0.0
          %572 = vmatprep.mubr.f32.mxu0 0.0
          %573 = vmatmul.mubr.f32.gmra.mrb[0].mxu0 %v501
          %v574 = vpop.f32.mrb[0].mxu0
          %v575 = vadd.f32 0.0, %v574
          %v576 = vpop.f32.mrb[0].mxu0
          %v577 = vadd.f32 0.0, %v576
          %578 = vdwg.mxu0
          %v580 = vsel %vm499, %v412, 0
          %v583 = vsel %vm503, %v415, 0
          %v586 = vsel %vm503, %v416, 0
          %588 = vmatprep.subr.mxu0 %v586
          %589 = vmatpush1.msra.mxu0 %v583
          %590 = vmatprep.subr.mxu0 0.0
          %591 = vmatpush1.msra.mxu0 0.0
          %592 = vmatprep.subr.mxu0 0.0
          %593 = vmatpush1.msra.mxu0 0.0
          %594 = vmatprep.subr.mxu0 0.0
          %595 = vmatpush1.msra.mxu0 0.0
          %596 = vmatprep.subr.mxu0 0.0
          %597 = vmatpush1.msra.mxu0 0.0
          %598 = vmatprep.subr.mxu0 0.0
          %599 = vmatpush1.msra.mxu0 0.0
          %600 = vmatprep.subr.mxu0 0.0
          %601 = vmatpush1.msra.mxu0 0.0
          %602 = vmatprep.subr.mxu0 0.0
          %603 = vmatpush1.msra.mxu0 0.0
          %604 = vmatprep.subr.mxu0 0.0
          %605 = vmatpush1.msra.mxu0 0.0
          %606 = vmatprep.subr.mxu0 0.0
          %607 = vmatpush1.msra.mxu0 0.0
          %608 = vmatprep.subr.mxu0 0.0
          %609 = vmatpush1.msra.mxu0 0.0
          %610 = vmatprep.subr.mxu0 0.0
          %611 = vmatpush1.msra.mxu0 0.0
          %612 = vmatprep.subr.mxu0 0.0
          %613 = vmatpush1.msra.mxu0 0.0
          %614 = vmatprep.subr.mxu0 0.0
          %615 = vmatpush1.msra.mxu0 0.0
          %616 = vmatprep.subr.mxu0 0.0
          %617 = vmatpush1.msra.mxu0 0.0
          %618 = vmatprep.subr.mxu0 0.0
          %619 = vmatpush1.msra.mxu0 0.0
          %620 = vmatprep.subr.mxu0 0.0
          %621 = vmatpush1.msra.mxu0 0.0
          %622 = vmatprep.subr.mxu0 0.0
          %623 = vmatpush1.msra.mxu0 0.0
          %624 = vmatprep.subr.mxu0 0.0
          %625 = vmatpush1.msra.mxu0 0.0
          %626 = vmatprep.subr.mxu0 0.0
          %627 = vmatpush1.msra.mxu0 0.0
          %628 = vmatprep.subr.mxu0 0.0
          %629 = vmatpush1.msra.mxu0 0.0
          %630 = vmatprep.subr.mxu0 0.0
          %631 = vmatpush1.msra.mxu0 0.0
          %632 = vmatprep.subr.mxu0 0.0
          %633 = vmatpush1.msra.mxu0 0.0
          %634 = vmatprep.subr.mxu0 0.0
          %635 = vmatpush1.msra.mxu0 0.0
          %636 = vmatprep.subr.mxu0 0.0
          %637 = vmatpush1.msra.mxu0 0.0
          %638 = vmatprep.subr.mxu0 0.0
          %639 = vmatpush1.msra.mxu0 0.0
          %640 = vmatprep.subr.mxu0 0.0
          %641 = vmatpush1.msra.mxu0 0.0
          %642 = vmatprep.subr.mxu0 0.0
          %643 = vmatpush1.msra.mxu0 0.0
          %644 = vmatprep.subr.mxu0 0.0
          %645 = vmatpush1.msra.mxu0 0.0
          %646 = vmatprep.subr.mxu0 0.0
          %647 = vmatpush1.msra.mxu0 0.0
          %648 = vmatprep.subr.mxu0 0.0
          %649 = vmatpush1.msra.mxu0 0.0
          %650 = vmatprep.subr.mxu0 0.0
          %651 = vmatpush1.msra.mxu0 0.0
          %652 = vmatprep.mubr.f32.mxu0 0.0
          %653 = vmatmul.mubr.f32.gmra.mrb[0].mxu0 %v580
          %v654 = vpop.f32.mrb[0].mxu0
          %v655 = vadd.f32 %v575, %v654
          %v656 = vpop.f32.mrb[0].mxu0
          %v657 = vadd.f32 %v577, %v656
          %658 = vdwg.mxu0
          %v659 = vld [vmem:[#allocation2 + $0x2] sm:$0x1]
          %v660 = vld [vmem:[#allocation2 + $0x6] sm:$0x1]
          %v661 = vadd.f32 %v659, %v660
          %v663 = vsel %vm319, %v661, 0
          %665 = vmatprep.subr.mxu0 0.0
          %666 = vmatpush1.msra.mxu0 %v338
          %667 = vmatprep.subr.mxu0 0.0
          %668 = vmatpush1.msra.mxu0 %v339
          %669 = vmatprep.subr.mxu0 0.0
          %670 = vmatpush1.msra.mxu0 %v340
          %671 = vmatprep.subr.mxu0 0.0
          %672 = vmatpush1.msra.mxu0 %v341
          %673 = vmatprep.subr.mxu0 0.0
          %674 = vmatpush1.msra.mxu0 0.0
          %675 = vmatprep.subr.mxu0 0.0
          %676 = vmatpush1.msra.mxu0 0.0
          %677 = vmatprep.subr.mxu0 0.0
          %678 = vmatpush1.msra.mxu0 0.0
          %679 = vmatprep.subr.mxu0 0.0
          %680 = vmatpush1.msra.mxu0 0.0
          %681 = vmatprep.subr.mxu0 0.0
          %682 = vmatpush1.msra.mxu0 0.0
          %683 = vmatprep.subr.mxu0 0.0
          %684 = vmatpush1.msra.mxu0 0.0
          %685 = vmatprep.subr.mxu0 0.0
          %686 = vmatpush1.msra.mxu0 0.0
          %687 = vmatprep.subr.mxu0 0.0
          %688 = vmatpush1.msra.mxu0 0.0
          %689 = vmatprep.subr.mxu0 0.0
          %690 = vmatpush1.msra.mxu0 0.0
          %691 = vmatprep.subr.mxu0 0.0
          %692 = vmatpush1.msra.mxu0 0.0
          %693 = vmatprep.subr.mxu0 0.0
          %694 = vmatpush1.msra.mxu0 0.0
          %695 = vmatprep.subr.mxu0 0.0
          %696 = vmatpush1.msra.mxu0 0.0
          %697 = vmatprep.subr.mxu0 0.0
          %698 = vmatpush1.msra.mxu0 0.0
          %699 = vmatprep.subr.mxu0 0.0
          %700 = vmatpush1.msra.mxu0 0.0
          %701 = vmatprep.subr.mxu0 0.0
          %702 = vmatpush1.msra.mxu0 0.0
          %703 = vmatprep.subr.mxu0 0.0
          %704 = vmatpush1.msra.mxu0 0.0
          %705 = vmatprep.subr.mxu0 0.0
          %706 = vmatpush1.msra.mxu0 0.0
          %707 = vmatprep.subr.mxu0 0.0
          %708 = vmatpush1.msra.mxu0 0.0
          %709 = vmatprep.subr.mxu0 0.0
          %710 = vmatpush1.msra.mxu0 0.0
          %711 = vmatprep.subr.mxu0 0.0
          %712 = vmatpush1.msra.mxu0 0.0
          %713 = vmatprep.subr.mxu0 0.0
          %714 = vmatpush1.msra.mxu0 0.0
          %715 = vmatprep.subr.mxu0 0.0
          %716 = vmatpush1.msra.mxu0 0.0
          %717 = vmatprep.subr.mxu0 0.0
          %718 = vmatpush1.msra.mxu0 0.0
          %719 = vmatprep.subr.mxu0 0.0
          %720 = vmatpush1.msra.mxu0 0.0
          %721 = vmatprep.subr.mxu0 0.0
          %722 = vmatpush1.msra.mxu0 0.0
          %723 = vmatprep.subr.mxu0 0.0
          %724 = vmatpush1.msra.mxu0 0.0
          %725 = vmatprep.subr.mxu0 0.0
          %726 = vmatpush1.msra.mxu0 0.0
          %727 = vmatprep.subr.mxu0 0.0
          %728 = vmatpush1.msra.mxu0 0.0
          %729 = vmatprep.mubr.f32.mxu0 0.0
          %730 = vmatmul.mubr.f32.gmra.mrb[0].mxu0 %v663
          %v731 = vpop.f32.mrb[0].mxu0
          %v732 = vadd.f32 0.0, %v731
          %v733 = vpop.f32.mrb[0].mxu0
          %734 = vdwg.mxu0
          %v735 = vld [vmem:[%s2 + $0x10] sm:$0xf]
          %v736 = vld [vmem:[%s2 + $0x18] sm:$0xf]
          %v738 = vsel %vm499, %v732, 0
          %v741 = vsel %vm503, %v735, 0
          %v744 = vsel %vm503, %v736, 0
          %746 = vmatprep.subr.mxu0 %v744
          %747 = vmatpush1.msra.mxu0 %v741
          %748 = vmatprep.subr.mxu0 0.0
          %749 = vmatpush1.msra.mxu0 0.0
          %750 = vmatprep.subr.mxu0 0.0
          %751 = vmatpush1.msra.mxu0 0.0
          %752 = vmatprep.subr.mxu0 0.0
          %753 = vmatpush1.msra.mxu0 0.0
          %754 = vmatprep.subr.mxu0 0.0
          %755 = vmatpush1.msra.mxu0 0.0
          %756 = vmatprep.subr.mxu0 0.0
          %757 = vmatpush1.msra.mxu0 0.0
          %758 = vmatprep.subr.mxu0 0.0
          %759 = vmatpush1.msra.mxu0 0.0
          %760 = vmatprep.subr.mxu0 0.0
          %761 = vmatpush1.msra.mxu0 0.0
          %762 = vmatprep.subr.mxu0 0.0
          %763 = vmatpush1.msra.mxu0 0.0
          %764 = vmatprep.subr.mxu0 0.0
          %765 = vmatpush1.msra.mxu0 0.0
          %766 = vmatprep.subr.mxu0 0.0
          %767 = vmatpush1.msra.mxu0 0.0
          %768 = vmatprep.subr.mxu0 0.0
          %769 = vmatpush1.msra.mxu0 0.0
          %770 = vmatprep.subr.mxu0 0.0
          %771 = vmatpush1.msra.mxu0 0.0
          %772 = vmatprep.subr.mxu0 0.0
          %773 = vmatpush1.msra.mxu0 0.0
          %774 = vmatprep.subr.mxu0 0.0
          %775 = vmatpush1.msra.mxu0 0.0
          %776 = vmatprep.subr.mxu0 0.0
          %777 = vmatpush1.msra.mxu0 0.0
          %778 = vmatprep.subr.mxu0 0.0
          %779 = vmatpush1.msra.mxu0 0.0
          %780 = vmatprep.subr.mxu0 0.0
          %781 = vmatpush1.msra.mxu0 0.0
          %782 = vmatprep.subr.mxu0 0.0
          %783 = vmatpush1.msra.mxu0 0.0
          %784 = vmatprep.subr.mxu0 0.0
          %785 = vmatpush1.msra.mxu0 0.0
          %786 = vmatprep.subr.mxu0 0.0
          %787 = vmatpush1.msra.mxu0 0.0
          %788 = vmatprep.subr.mxu0 0.0
          %789 = vmatpush1.msra.mxu0 0.0
          %790 = vmatprep.subr.mxu0 0.0
          %791 = vmatpush1.msra.mxu0 0.0
          %792 = vmatprep.subr.mxu0 0.0
          %793 = vmatpush1.msra.mxu0 0.0
          %794 = vmatprep.subr.mxu0 0.0
          %795 = vmatpush1.msra.mxu0 0.0
          %796 = vmatprep.subr.mxu0 0.0
          %797 = vmatpush1.msra.mxu0 0.0
          %798 = vmatprep.subr.mxu0 0.0
          %799 = vmatpush1.msra.mxu0 0.0
          %800 = vmatprep.subr.mxu0 0.0
          %801 = vmatpush1.msra.mxu0 0.0
          %802 = vmatprep.subr.mxu0 0.0
          %803 = vmatpush1.msra.mxu0 0.0
          %804 = vmatprep.subr.mxu0 0.0
          %805 = vmatpush1.msra.mxu0 0.0
          %806 = vmatprep.subr.mxu0 0.0
          %807 = vmatpush1.msra.mxu0 0.0
          %808 = vmatprep.subr.mxu0 0.0
          %809 = vmatpush1.msra.mxu0 0.0
          %810 = vmatprep.mubr.f32.mxu0 0.0
          %811 = vmatmul.mubr.f32.gmra.mrb[0].mxu0 %v738
          %v812 = vpop.f32.mrb[0].mxu0
          %v813 = vadd.f32 0.0, %v812
          %v814 = vpop.f32.mrb[0].mxu0
          %v815 = vadd.f32 0.0, %v814
          %816 = vdwg.mxu0
          %v817 = vadd.f32 %v655, %v813
          %v818 = vadd.f32 %v657, %v815
          %v819 = vld [vmem:[#allocation2 + $0x3] sm:$0x1]
          %v820 = vld [vmem:[#allocation2 + $0x7] sm:$0x1]
          %v821 = vadd.f32 %v819, %v820
          %v823 = vsel %vm319, %v821, 0
          %825 = vmatprep.subr.mxu0 0.0
          %826 = vmatpush1.msra.mxu0 %v338
          %827 = vmatprep.subr.mxu0 0.0
          %828 = vmatpush1.msra.mxu0 %v339
          %829 = vmatprep.subr.mxu0 0.0
          %830 = vmatpush1.msra.mxu0 %v340
          %831 = vmatprep.subr.mxu0 0.0
          %832 = vmatpush1.msra.mxu0 %v341
          %833 = vmatprep.subr.mxu0 0.0
          %834 = vmatpush1.msra.mxu0 0.0
          %835 = vmatprep.subr.mxu0 0.0
          %836 = vmatpush1.msra.mxu0 0.0
          %837 = vmatprep.subr.mxu0 0.0
          %838 = vmatpush1.msra.mxu0 0.0
          %839 = vmatprep.subr.mxu0 0.0
          %840 = vmatpush1.msra.mxu0 0.0
          %841 = vmatprep.subr.mxu0 0.0
          %842 = vmatpush1.msra.mxu0 0.0
          %843 = vmatprep.subr.mxu0 0.0
          %844 = vmatpush1.msra.mxu0 0.0
          %845 = vmatprep.subr.mxu0 0.0
          %846 = vmatpush1.msra.mxu0 0.0
          %847 = vmatprep.subr.mxu0 0.0
          %848 = vmatpush1.msra.mxu0 0.0
          %849 = vmatprep.subr.mxu0 0.0
          %850 = vmatpush1.msra.mxu0 0.0
          %851 = vmatprep.subr.mxu0 0.0
          %852 = vmatpush1.msra.mxu0 0.0
          %853 = vmatprep.subr.mxu0 0.0
          %854 = vmatpush1.msra.mxu0 0.0
          %855 = vmatprep.subr.mxu0 0.0
          %856 = vmatpush1.msra.mxu0 0.0
          %857 = vmatprep.subr.mxu0 0.0
          %858 = vmatpush1.msra.mxu0 0.0
          %859 = vmatprep.subr.mxu0 0.0
          %860 = vmatpush1.msra.mxu0 0.0
          %861 = vmatprep.subr.mxu0 0.0
          %862 = vmatpush1.msra.mxu0 0.0
          %863 = vmatprep.subr.mxu0 0.0
          %864 = vmatpush1.msra.mxu0 0.0
          %865 = vmatprep.subr.mxu0 0.0
          %866 = vmatpush1.msra.mxu0 0.0
          %867 = vmatprep.subr.mxu0 0.0
          %868 = vmatpush1.msra.mxu0 0.0
          %869 = vmatprep.subr.mxu0 0.0
          %870 = vmatpush1.msra.mxu0 0.0
          %871 = vmatprep.subr.mxu0 0.0
          %872 = vmatpush1.msra.mxu0 0.0
          %873 = vmatprep.subr.mxu0 0.0
          %874 = vmatpush1.msra.mxu0 0.0
          %875 = vmatprep.subr.mxu0 0.0
          %876 = vmatpush1.msra.mxu0 0.0
          %877 = vmatprep.subr.mxu0 0.0
          %878 = vmatpush1.msra.mxu0 0.0
          %879 = vmatprep.subr.mxu0 0.0
          %880 = vmatpush1.msra.mxu0 0.0
          %881 = vmatprep.subr.mxu0 0.0
          %882 = vmatpush1.msra.mxu0 0.0
          %883 = vmatprep.subr.mxu0 0.0
          %884 = vmatpush1.msra.mxu0 0.0
          %885 = vmatprep.subr.mxu0 0.0
          %886 = vmatpush1.msra.mxu0 0.0
          %887 = vmatprep.subr.mxu0 0.0
          %888 = vmatpush1.msra.mxu0 0.0
          %889 = vmatprep.mubr.f32.mxu0 0.0
          %890 = vmatmul.mubr.f32.gmra.mrb[0].mxu0 %v823
          %v891 = vpop.f32.mrb[0].mxu0
          %v892 = vadd.f32 0.0, %v891
          %v893 = vpop.f32.mrb[0].mxu0
          %894 = vdwg.mxu0
          %v895 = vld [vmem:[%s2 + $0x10] sm:$0xf0]
          %v896 = vld [vmem:[%s2 + $0x18] sm:$0xf0]
          %v899 = vrot.slane %v895, 4
          %v900 = vrot.slane %v896, 4
          %v902 = vsel %vm499, %v892, 0
          %v904 = vsel %vm503, %v899, 0
          %v906 = vsel %vm503, %v900, 0
          %908 = vmatprep.subr.mxu0 %v906
          %909 = vmatpush1.msra.mxu0 %v904
          %910 = vmatprep.subr.mxu0 0.0
          %911 = vmatpush1.msra.mxu0 0.0
          %912 = vmatprep.subr.mxu0 0.0
          %913 = vmatpush1.msra.mxu0 0.0
          %914 = vmatprep.subr.mxu0 0.0
          %915 = vmatpush1.msra.mxu0 0.0
          %916 = vmatprep.subr.mxu0 0.0
          %917 = vmatpush1.msra.mxu0 0.0
          %918 = vmatprep.subr.mxu0 0.0
          %919 = vmatpush1.msra.mxu0 0.0
          %920 = vmatprep.subr.mxu0 0.0
          %921 = vmatpush1.msra.mxu0 0.0
          %922 = vmatprep.subr.mxu0 0.0
          %923 = vmatpush1.msra.mxu0 0.0
          %924 = vmatprep.subr.mxu0 0.0
          %925 = vmatpush1.msra.mxu0 0.0
          %926 = vmatprep.subr.mxu0 0.0
          %927 = vmatpush1.msra.mxu0 0.0
          %928 = vmatprep.subr.mxu0 0.0
          %929 = vmatpush1.msra.mxu0 0.0
          %930 = vmatprep.subr.mxu0 0.0
          %931 = vmatpush1.msra.mxu0 0.0
          %932 = vmatprep.subr.mxu0 0.0
          %933 = vmatpush1.msra.mxu0 0.0
          %934 = vmatprep.subr.mxu0 0.0
          %935 = vmatpush1.msra.mxu0 0.0
          %936 = vmatprep.subr.mxu0 0.0
          %937 = vmatpush1.msra.mxu0 0.0
          %938 = vmatprep.subr.mxu0 0.0
          %939 = vmatpush1.msra.mxu0 0.0
          %940 = vmatprep.subr.mxu0 0.0
          %941 = vmatpush1.msra.mxu0 0.0
          %942 = vmatprep.subr.mxu0 0.0
          %943 = vmatpush1.msra.mxu0 0.0
          %944 = vmatprep.subr.mxu0 0.0
          %945 = vmatpush1.msra.mxu0 0.0
          %946 = vmatprep.subr.mxu0 0.0
          %947 = vmatpush1.msra.mxu0 0.0
          %948 = vmatprep.subr.mxu0 0.0
          %949 = vmatpush1.msra.mxu0 0.0
          %950 = vmatprep.subr.mxu0 0.0
          %951 = vmatpush1.msra.mxu0 0.0
          %952 = vmatprep.subr.mxu0 0.0
          %953 = vmatpush1.msra.mxu0 0.0
          %954 = vmatprep.subr.mxu0 0.0
          %955 = vmatpush1.msra.mxu0 0.0
          %956 = vmatprep.subr.mxu0 0.0
          %957 = vmatpush1.msra.mxu0 0.0
          %958 = vmatprep.subr.mxu0 0.0
          %959 = vmatpush1.msra.mxu0 0.0
          %960 = vmatprep.subr.mxu0 0.0
          %961 = vmatpush1.msra.mxu0 0.0
          %962 = vmatprep.subr.mxu0 0.0
          %963 = vmatpush1.msra.mxu0 0.0
          %964 = vmatprep.subr.mxu0 0.0
          %965 = vmatpush1.msra.mxu0 0.0
          %966 = vmatprep.subr.mxu0 0.0
          %967 = vmatpush1.msra.mxu0 0.0
          %968 = vmatprep.subr.mxu0 0.0
          %969 = vmatpush1.msra.mxu0 0.0
          %970 = vmatprep.subr.mxu0 0.0
          %971 = vmatpush1.msra.mxu0 0.0
          %972 = vmatprep.mubr.f32.mxu0 0.0
          %973 = vmatmul.mubr.f32.gmra.mrb[0].mxu0 %v902
          %v974 = vpop.f32.mrb[0].mxu0
          %v975 = vadd.f32 0.0, %v974
          %v976 = vpop.f32.mrb[0].mxu0
          %v977 = vadd.f32 0.0, %v976
          %978 = vdwg.mxu0
          %v979 = vadd.f32 %v817, %v975
          %v980 = vadd.f32 %v818, %v977
          %v981 = vld [vmem:[#allocation2 + $0x8] sm:$0x1]
          %v982 = vld [vmem:[#allocation2 + $0xc] sm:$0x1]
          %v983 = vadd.f32 %v981, %v982
          %v985 = vsel %vm319, %v983, 0
          %987 = vmatprep.subr.mxu0 0.0
          %988 = vmatpush1.msra.mxu0 %v338
          %989 = vmatprep.subr.mxu0 0.0
          %990 = vmatpush1.msra.mxu0 %v339
          %991 = vmatprep.subr.mxu0 0.0
          %992 = vmatpush1.msra.mxu0 %v340
          %993 = vmatprep.subr.mxu0 0.0
          %994 = vmatpush1.msra.mxu0 %v341
          %995 = vmatprep.subr.mxu0 0.0
          %996 = vmatpush1.msra.mxu0 0.0
          %997 = vmatprep.subr.mxu0 0.0
          %998 = vmatpush1.msra.mxu0 0.0
          %999 = vmatprep.subr.mxu0 0.0
          %1000 = vmatpush1.msra.mxu0 0.0
          %1001 = vmatprep.subr.mxu0 0.0
          %1002 = vmatpush1.msra.mxu0 0.0
          %1003 = vmatprep.subr.mxu0 0.0
          %1004 = vmatpush1.msra.mxu0 0.0
          %1005 = vmatprep.subr.mxu0 0.0
          %1006 = vmatpush1.msra.mxu0 0.0
          %1007 = vmatprep.subr.mxu0 0.0
          %1008 = vmatpush1.msra.mxu0 0.0
          %1009 = vmatprep.subr.mxu0 0.0
          %1010 = vmatpush1.msra.mxu0 0.0
          %1011 = vmatprep.subr.mxu0 0.0
          %1012 = vmatpush1.msra.mxu0 0.0
          %1013 = vmatprep.subr.mxu0 0.0
          %1014 = vmatpush1.msra.mxu0 0.0
          %1015 = vmatprep.subr.mxu0 0.0
          %1016 = vmatpush1.msra.mxu0 0.0
          %1017 = vmatprep.subr.mxu0 0.0
          %1018 = vmatpush1.msra.mxu0 0.0
          %1019 = vmatprep.subr.mxu0 0.0
          %1020 = vmatpush1.msra.mxu0 0.0
          %1021 = vmatprep.subr.mxu0 0.0
          %1022 = vmatpush1.msra.mxu0 0.0
          %1023 = vmatprep.subr.mxu0 0.0
          %1024 = vmatpush1.msra.mxu0 0.0
          %1025 = vmatprep.subr.mxu0 0.0
          %1026 = vmatpush1.msra.mxu0 0.0
          %1027 = vmatprep.subr.mxu0 0.0
          %1028 = vmatpush1.msra.mxu0 0.0
          %1029 = vmatprep.subr.mxu0 0.0
          %1030 = vmatpush1.msra.mxu0 0.0
          %1031 = vmatprep.subr.mxu0 0.0
          %1032 = vmatpush1.msra.mxu0 0.0
          %1033 = vmatprep.subr.mxu0 0.0
          %1034 = vmatpush1.msra.mxu0 0.0
          %1035 = vmatprep.subr.mxu0 0.0
          %1036 = vmatpush1.msra.mxu0 0.0
          %1037 = vmatprep.subr.mxu0 0.0
          %1038 = vmatpush1.msra.mxu0 0.0
          %1039 = vmatprep.subr.mxu0 0.0
          %1040 = vmatpush1.msra.mxu0 0.0
          %1041 = vmatprep.subr.mxu0 0.0
          %1042 = vmatpush1.msra.mxu0 0.0
          %1043 = vmatprep.subr.mxu0 0.0
          %1044 = vmatpush1.msra.mxu0 0.0
          %1045 = vmatprep.subr.mxu0 0.0
          %1046 = vmatpush1.msra.mxu0 0.0
          %1047 = vmatprep.subr.mxu0 0.0
          %1048 = vmatpush1.msra.mxu0 0.0
          %1049 = vmatprep.subr.mxu0 0.0
          %1050 = vmatpush1.msra.mxu0 0.0
          %1051 = vmatprep.mubr.f32.mxu0 0.0
          %1052 = vmatmul.mubr.f32.gmra.mrb[0].mxu0 %v985
          %v1053 = vpop.f32.mrb[0].mxu0
          %v1054 = vadd.f32 0.0, %v1053
          %v1055 = vpop.f32.mrb[0].mxu0
          %1056 = vdwg.mxu0
          %v1057 = vld [vmem:[%s2 + $0x20] sm:$0xf]
          %v1058 = vld [vmem:[%s2 + $0x28] sm:$0xf]
          %v1060 = vsel %vm499, %v1054, 0
          %v1063 = vsel %vm503, %v1057, 0
          %v1066 = vsel %vm503, %v1058, 0
          %1068 = vmatprep.subr.mxu0 %v1066
          %1069 = vmatpush1.msra.mxu0 %v1063
          %1070 = vmatprep.subr.mxu0 0.0
          %1071 = vmatpush1.msra.mxu0 0.0
          %1072 = vmatprep.subr.mxu0 0.0
          %1073 = vmatpush1.msra.mxu0 0.0
          %1074 = vmatprep.subr.mxu0 0.0
          %1075 = vmatpush1.msra.mxu0 0.0
          %1076 = vmatprep.subr.mxu0 0.0
          %1077 = vmatpush1.msra.mxu0 0.0
          %1078 = vmatprep.subr.mxu0 0.0
          %1079 = vmatpush1.msra.mxu0 0.0
          %1080 = vmatprep.subr.mxu0 0.0
          %1081 = vmatpush1.msra.mxu0 0.0
          %1082 = vmatprep.subr.mxu0 0.0
          %1083 = vmatpush1.msra.mxu0 0.0
          %1084 = vmatprep.subr.mxu0 0.0
          %1085 = vmatpush1.msra.mxu0 0.0
          %1086 = vmatprep.subr.mxu0 0.0
          %1087 = vmatpush1.msra.mxu0 0.0
          %1088 = vmatprep.subr.mxu0 0.0
          %1089 = vmatpush1.msra.mxu0 0.0
          %1090 = vmatprep.subr.mxu0 0.0
          %1091 = vmatpush1.msra.mxu0 0.0
          %1092 = vmatprep.subr.mxu0 0.0
          %1093 = vmatpush1.msra.mxu0 0.0
          %1094 = vmatprep.subr.mxu0 0.0
          %1095 = vmatpush1.msra.mxu0 0.0
          %1096 = vmatprep.subr.mxu0 0.0
          %1097 = vmatpush1.msra.mxu0 0.0
          %1098 = vmatprep.subr.mxu0 0.0
          %1099 = vmatpush1.msra.mxu0 0.0
          %1100 = vmatprep.subr.mxu0 0.0
          %1101 = vmatpush1.msra.mxu0 0.0
          %1102 = vmatprep.subr.mxu0 0.0
          %1103 = vmatpush1.msra.mxu0 0.0
          %1104 = vmatprep.subr.mxu0 0.0
          %1105 = vmatpush1.msra.mxu0 0.0
          %1106 = vmatprep.subr.mxu0 0.0
          %1107 = vmatpush1.msra.mxu0 0.0
          %1108 = vmatprep.subr.mxu0 0.0
          %1109 = vmatpush1.msra.mxu0 0.0
          %1110 = vmatprep.subr.mxu0 0.0
          %1111 = vmatpush1.msra.mxu0 0.0
          %1112 = vmatprep.subr.mxu0 0.0
          %1113 = vmatpush1.msra.mxu0 0.0
          %1114 = vmatprep.subr.mxu0 0.0
          %1115 = vmatpush1.msra.mxu0 0.0
          %1116 = vmatprep.subr.mxu0 0.0
          %1117 = vmatpush1.msra.mxu0 0.0
          %1118 = vmatprep.subr.mxu0 0.0
          %1119 = vmatpush1.msra.mxu0 0.0
          %1120 = vmatprep.subr.mxu0 0.0
          %1121 = vmatpush1.msra.mxu0 0.0
          %1122 = vmatprep.subr.mxu0 0.0
          %1123 = vmatpush1.msra.mxu0 0.0
          %1124 = vmatprep.subr.mxu0 0.0
          %1125 = vmatpush1.msra.mxu0 0.0
          %1126 = vmatprep.subr.mxu0 0.0
          %1127 = vmatpush1.msra.mxu0 0.0
          %1128 = vmatprep.subr.mxu0 0.0
          %1129 = vmatpush1.msra.mxu0 0.0
          %1130 = vmatprep.subr.mxu0 0.0
          %1131 = vmatpush1.msra.mxu0 0.0
          %1132 = vmatprep.mubr.f32.mxu0 0.0
          %1133 = vmatmul.mubr.f32.gmra.mrb[0].mxu0 %v1060
          %v1134 = vpop.f32.mrb[0].mxu0
          %v1135 = vadd.f32 0.0, %v1134
          %v1136 = vpop.f32.mrb[0].mxu0
          %v1137 = vadd.f32 0.0, %v1136
          %1138 = vdwg.mxu0
          %v1139 = vadd.f32 %v979, %v1135
          %v1140 = vadd.f32 %v980, %v1137
          %v1141 = vld [vmem:[#allocation2 + $0x9] sm:$0x1]
          %v1142 = vld [vmem:[#allocation2 + $0xd] sm:$0x1]
          %v1143 = vadd.f32 %v1141, %v1142
          %v1145 = vsel %vm319, %v1143, 0
          %1147 = vmatprep.subr.mxu0 0.0
          %1148 = vmatpush1.msra.mxu0 %v338
          %1149 = vmatprep.subr.mxu0 0.0
          %1150 = vmatpush1.msra.mxu0 %v339
          %1151 = vmatprep.subr.mxu0 0.0
          %1152 = vmatpush1.msra.mxu0 %v340
          %1153 = vmatprep.subr.mxu0 0.0
          %1154 = vmatpush1.msra.mxu0 %v341
          %1155 = vmatprep.subr.mxu0 0.0
          %1156 = vmatpush1.msra.mxu0 0.0
          %1157 = vmatprep.subr.mxu0 0.0
          %1158 = vmatpush1.msra.mxu0 0.0
          %1159 = vmatprep.subr.mxu0 0.0
          %1160 = vmatpush1.msra.mxu0 0.0
          %1161 = vmatprep.subr.mxu0 0.0
          %1162 = vmatpush1.msra.mxu0 0.0
          %1163 = vmatprep.subr.mxu0 0.0
          %1164 = vmatpush1.msra.mxu0 0.0
          %1165 = vmatprep.subr.mxu0 0.0
          %1166 = vmatpush1.msra.mxu0 0.0
          %1167 = vmatprep.subr.mxu0 0.0
          %1168 = vmatpush1.msra.mxu0 0.0
          %1169 = vmatprep.subr.mxu0 0.0
          %1170 = vmatpush1.msra.mxu0 0.0
          %1171 = vmatprep.subr.mxu0 0.0
          %1172 = vmatpush1.msra.mxu0 0.0
          %1173 = vmatprep.subr.mxu0 0.0
          %1174 = vmatpush1.msra.mxu0 0.0
          %1175 = vmatprep.subr.mxu0 0.0
          %1176 = vmatpush1.msra.mxu0 0.0
          %1177 = vmatprep.subr.mxu0 0.0
          %1178 = vmatpush1.msra.mxu0 0.0
          %1179 = vmatprep.subr.mxu0 0.0
          %1180 = vmatpush1.msra.mxu0 0.0
          %1181 = vmatprep.subr.mxu0 0.0
          %1182 = vmatpush1.msra.mxu0 0.0
          %1183 = vmatprep.subr.mxu0 0.0
          %1184 = vmatpush1.msra.mxu0 0.0
          %1185 = vmatprep.subr.mxu0 0.0
          %1186 = vmatpush1.msra.mxu0 0.0
          %1187 = vmatprep.subr.mxu0 0.0
          %1188 = vmatpush1.msra.mxu0 0.0
          %1189 = vmatprep.subr.mxu0 0.0
          %1190 = vmatpush1.msra.mxu0 0.0
          %1191 = vmatprep.subr.mxu0 0.0
          %1192 = vmatpush1.msra.mxu0 0.0
          %1193 = vmatprep.subr.mxu0 0.0
          %1194 = vmatpush1.msra.mxu0 0.0
          %1195 = vmatprep.subr.mxu0 0.0
          %1196 = vmatpush1.msra.mxu0 0.0
          %1197 = vmatprep.subr.mxu0 0.0
          %1198 = vmatpush1.msra.mxu0 0.0
          %1199 = vmatprep.subr.mxu0 0.0
          %1200 = vmatpush1.msra.mxu0 0.0
          %1201 = vmatprep.subr.mxu0 0.0
          %1202 = vmatpush1.msra.mxu0 0.0
          %1203 = vmatprep.subr.mxu0 0.0
          %1204 = vmatpush1.msra.mxu0 0.0
          %1205 = vmatprep.subr.mxu0 0.0
          %1206 = vmatpush1.msra.mxu0 0.0
          %1207 = vmatprep.subr.mxu0 0.0
          %1208 = vmatpush1.msra.mxu0 0.0
          %1209 = vmatprep.subr.mxu0 0.0
          %1210 = vmatpush1.msra.mxu0 0.0
          %1211 = vmatprep.mubr.f32.mxu0 0.0
          %1212 = vmatmul.mubr.f32.gmra.mrb[0].mxu0 %v1145
          %v1213 = vpop.f32.mrb[0].mxu0
          %v1214 = vadd.f32 0.0, %v1213
          %v1215 = vpop.f32.mrb[0].mxu0
          %1216 = vdwg.mxu0
          %v1217 = vld [vmem:[%s2 + $0x20] sm:$0xf0]
          %v1218 = vld [vmem:[%s2 + $0x28] sm:$0xf0]
          %v1221 = vrot.slane %v1217, 4
          %v1222 = vrot.slane %v1218, 4
          %v1224 = vsel %vm499, %v1214, 0
          %v1226 = vsel %vm503, %v1221, 0
          %v1228 = vsel %vm503, %v1222, 0
          %1230 = vmatprep.subr.mxu0 %v1228
          %1231 = vmatpush1.msra.mxu0 %v1226
          %1232 = vmatprep.subr.mxu0 0.0
          %1233 = vmatpush1.msra.mxu0 0.0
          %1234 = vmatprep.subr.mxu0 0.0
          %1235 = vmatpush1.msra.mxu0 0.0
          %1236 = vmatprep.subr.mxu0 0.0
          %1237 = vmatpush1.msra.mxu0 0.0
          %1238 = vmatprep.subr.mxu0 0.0
          %1239 = vmatpush1.msra.mxu0 0.0
          %1240 = vmatprep.subr.mxu0 0.0
          %1241 = vmatpush1.msra.mxu0 0.0
          %1242 = vmatprep.subr.mxu0 0.0
          %1243 = vmatpush1.msra.mxu0 0.0
          %1244 = vmatprep.subr.mxu0 0.0
          %1245 = vmatpush1.msra.mxu0 0.0
          %1246 = vmatprep.subr.mxu0 0.0
          %1247 = vmatpush1.msra.mxu0 0.0
          %1248 = vmatprep.subr.mxu0 0.0
          %1249 = vmatpush1.msra.mxu0 0.0
          %1250 = vmatprep.subr.mxu0 0.0
          %1251 = vmatpush1.msra.mxu0 0.0
          %1252 = vmatprep.subr.mxu0 0.0
          %1253 = vmatpush1.msra.mxu0 0.0
          %1254 = vmatprep.subr.mxu0 0.0
          %1255 = vmatpush1.msra.mxu0 0.0
          %1256 = vmatprep.subr.mxu0 0.0
          %1257 = vmatpush1.msra.mxu0 0.0
          %1258 = vmatprep.subr.mxu0 0.0
          %1259 = vmatpush1.msra.mxu0 0.0
          %1260 = vmatprep.subr.mxu0 0.0
          %1261 = vmatpush1.msra.mxu0 0.0
          %1262 = vmatprep.subr.mxu0 0.0
          %1263 = vmatpush1.msra.mxu0 0.0
          %1264 = vmatprep.subr.mxu0 0.0
          %1265 = vmatpush1.msra.mxu0 0.0
          %1266 = vmatprep.subr.mxu0 0.0
          %1267 = vmatpush1.msra.mxu0 0.0
          %1268 = vmatprep.subr.mxu0 0.0
          %1269 = vmatpush1.msra.mxu0 0.0
          %1270 = vmatprep.subr.mxu0 0.0
          %1271 = vmatpush1.msra.mxu0 0.0
          %1272 = vmatprep.subr.mxu0 0.0
          %1273 = vmatpush1.msra.mxu0 0.0
          %1274 = vmatprep.subr.mxu0 0.0
          %1275 = vmatpush1.msra.mxu0 0.0
          %1276 = vmatprep.subr.mxu0 0.0
          %1277 = vmatpush1.msra.mxu0 0.0
          %1278 = vmatprep.subr.mxu0 0.0
          %1279 = vmatpush1.msra.mxu0 0.0
          %1280 = vmatprep.subr.mxu0 0.0
          %1281 = vmatpush1.msra.mxu0 0.0
          %1282 = vmatprep.subr.mxu0 0.0
          %1283 = vmatpush1.msra.mxu0 0.0
          %1284 = vmatprep.subr.mxu0 0.0
          %1285 = vmatpush1.msra.mxu0 0.0
          %1286 = vmatprep.subr.mxu0 0.0
          %1287 = vmatpush1.msra.mxu0 0.0
          %1288 = vmatprep.subr.mxu0 0.0
          %1289 = vmatpush1.msra.mxu0 0.0
          %1290 = vmatprep.subr.mxu0 0.0
          %1291 = vmatpush1.msra.mxu0 0.0
          %1292 = vmatprep.subr.mxu0 0.0
          %1293 = vmatpush1.msra.mxu0 0.0
          %1294 = vmatprep.mubr.f32.mxu0 0.0
          %1295 = vmatmul.mubr.f32.gmra.mrb[0].mxu0 %v1224
          %v1296 = vpop.f32.mrb[0].mxu0
          %v1297 = vadd.f32 0.0, %v1296
          %v1298 = vpop.f32.mrb[0].mxu0
          %v1299 = vadd.f32 0.0, %v1298
          %1300 = vdwg.mxu0
          %v1301 = vadd.f32 %v1139, %v1297
          %v1302 = vadd.f32 %v1140, %v1299
          %v1303 = vld [vmem:[#allocation2 + $0xa] sm:$0x1]
          %v1304 = vld [vmem:[#allocation2 + $0xe] sm:$0x1]
          %v1305 = vadd.f32 %v1303, %v1304
          %v1307 = vsel %vm319, %v1305, 0
          %1309 = vmatprep.subr.mxu0 0.0
          %1310 = vmatpush1.msra.mxu0 %v338
          %1311 = vmatprep.subr.mxu0 0.0
          %1312 = vmatpush1.msra.mxu0 %v339
          %1313 = vmatprep.subr.mxu0 0.0
          %1314 = vmatpush1.msra.mxu0 %v340
          %1315 = vmatprep.subr.mxu0 0.0
          %1316 = vmatpush1.msra.mxu0 %v341
          %1317 = vmatprep.subr.mxu0 0.0
          %1318 = vmatpush1.msra.mxu0 0.0
          %1319 = vmatprep.subr.mxu0 0.0
          %1320 = vmatpush1.msra.mxu0 0.0
          %1321 = vmatprep.subr.mxu0 0.0
          %1322 = vmatpush1.msra.mxu0 0.0
          %1323 = vmatprep.subr.mxu0 0.0
          %1324 = vmatpush1.msra.mxu0 0.0
          %1325 = vmatprep.subr.mxu0 0.0
          %1326 = vmatpush1.msra.mxu0 0.0
          %1327 = vmatprep.subr.mxu0 0.0
          %1328 = vmatpush1.msra.mxu0 0.0
          %1329 = vmatprep.subr.mxu0 0.0
          %1330 = vmatpush1.msra.mxu0 0.0
          %1331 = vmatprep.subr.mxu0 0.0
          %1332 = vmatpush1.msra.mxu0 0.0
          %1333 = vmatprep.subr.mxu0 0.0
          %1334 = vmatpush1.msra.mxu0 0.0
          %1335 = vmatprep.subr.mxu0 0.0
          %1336 = vmatpush1.msra.mxu0 0.0
          %1337 = vmatprep.subr.mxu0 0.0
          %1338 = vmatpush1.msra.mxu0 0.0
          %1339 = vmatprep.subr.mxu0 0.0
          %1340 = vmatpush1.msra.mxu0 0.0
          %1341 = vmatprep.subr.mxu0 0.0
          %1342 = vmatpush1.msra.mxu0 0.0
          %1343 = vmatprep.subr.mxu0 0.0
          %1344 = vmatpush1.msra.mxu0 0.0
          %1345 = vmatprep.subr.mxu0 0.0
          %1346 = vmatpush1.msra.mxu0 0.0
          %1347 = vmatprep.subr.mxu0 0.0
          %1348 = vmatpush1.msra.mxu0 0.0
          %1349 = vmatprep.subr.mxu0 0.0
          %1350 = vmatpush1.msra.mxu0 0.0
          %1351 = vmatprep.subr.mxu0 0.0
          %1352 = vmatpush1.msra.mxu0 0.0
          %1353 = vmatprep.subr.mxu0 0.0
          %1354 = vmatpush1.msra.mxu0 0.0
          %1355 = vmatprep.subr.mxu0 0.0
          %1356 = vmatpush1.msra.mxu0 0.0
          %1357 = vmatprep.subr.mxu0 0.0
          %1358 = vmatpush1.msra.mxu0 0.0
          %1359 = vmatprep.subr.mxu0 0.0
          %1360 = vmatpush1.msra.mxu0 0.0
          %1361 = vmatprep.subr.mxu0 0.0
          %1362 = vmatpush1.msra.mxu0 0.0
          %1363 = vmatprep.subr.mxu0 0.0
          %1364 = vmatpush1.msra.mxu0 0.0
          %1365 = vmatprep.subr.mxu0 0.0
          %1366 = vmatpush1.msra.mxu0 0.0
          %1367 = vmatprep.subr.mxu0 0.0
          %1368 = vmatpush1.msra.mxu0 0.0
          %1369 = vmatprep.subr.mxu0 0.0
          %1370 = vmatpush1.msra.mxu0 0.0
          %1371 = vmatprep.subr.mxu0 0.0
          %1372 = vmatpush1.msra.mxu0 0.0
          %1373 = vmatprep.mubr.f32.mxu0 0.0
          %1374 = vmatmul.mubr.f32.gmra.mrb[0].mxu0 %v1307
          %v1375 = vpop.f32.mrb[0].mxu0
          %v1376 = vadd.f32 0.0, %v1375
          %v1377 = vpop.f32.mrb[0].mxu0
          %1378 = vdwg.mxu0
          %v1379 = vld [vmem:[%s2 + $0x30] sm:$0xf]
          %v1380 = vld [vmem:[%s2 + $0x38] sm:$0xf]
          %v1382 = vsel %vm499, %v1376, 0
          %v1385 = vsel %vm503, %v1379, 0
          %v1388 = vsel %vm503, %v1380, 0
          %1390 = vmatprep.subr.mxu0 %v1388
          %1391 = vmatpush1.msra.mxu0 %v1385
          %1392 = vmatprep.subr.mxu0 0.0
          %1393 = vmatpush1.msra.mxu0 0.0
          %1394 = vmatprep.subr.mxu0 0.0
          %1395 = vmatpush1.msra.mxu0 0.0
          %1396 = vmatprep.subr.mxu0 0.0
          %1397 = vmatpush1.msra.mxu0 0.0
          %1398 = vmatprep.subr.mxu0 0.0
          %1399 = vmatpush1.msra.mxu0 0.0
          %1400 = vmatprep.subr.mxu0 0.0
          %1401 = vmatpush1.msra.mxu0 0.0
          %1402 = vmatprep.subr.mxu0 0.0
          %1403 = vmatpush1.msra.mxu0 0.0
          %1404 = vmatprep.subr.mxu0 0.0
          %1405 = vmatpush1.msra.mxu0 0.0
          %1406 = vmatprep.subr.mxu0 0.0
          %1407 = vmatpush1.msra.mxu0 0.0
          %1408 = vmatprep.subr.mxu0 0.0
          %1409 = vmatpush1.msra.mxu0 0.0
          %1410 = vmatprep.subr.mxu0 0.0
          %1411 = vmatpush1.msra.mxu0 0.0
          %1412 = vmatprep.subr.mxu0 0.0
          %1413 = vmatpush1.msra.mxu0 0.0
          %1414 = vmatprep.subr.mxu0 0.0
          %1415 = vmatpush1.msra.mxu0 0.0
          %1416 = vmatprep.subr.mxu0 0.0
          %1417 = vmatpush1.msra.mxu0 0.0
          %1418 = vmatprep.subr.mxu0 0.0
          %1419 = vmatpush1.msra.mxu0 0.0
          %1420 = vmatprep.subr.mxu0 0.0
          %1421 = vmatpush1.msra.mxu0 0.0
          %1422 = vmatprep.subr.mxu0 0.0
          %1423 = vmatpush1.msra.mxu0 0.0
          %1424 = vmatprep.subr.mxu0 0.0
          %1425 = vmatpush1.msra.mxu0 0.0
          %1426 = vmatprep.subr.mxu0 0.0
          %1427 = vmatpush1.msra.mxu0 0.0
          %1428 = vmatprep.subr.mxu0 0.0
          %1429 = vmatpush1.msra.mxu0 0.0
          %1430 = vmatprep.subr.mxu0 0.0
          %1431 = vmatpush1.msra.mxu0 0.0
          %1432 = vmatprep.subr.mxu0 0.0
          %1433 = vmatpush1.msra.mxu0 0.0
          %1434 = vmatprep.subr.mxu0 0.0
          %1435 = vmatpush1.msra.mxu0 0.0
          %1436 = vmatprep.subr.mxu0 0.0
          %1437 = vmatpush1.msra.mxu0 0.0
          %1438 = vmatprep.subr.mxu0 0.0
          %1439 = vmatpush1.msra.mxu0 0.0
          %1440 = vmatprep.subr.mxu0 0.0
          %1441 = vmatpush1.msra.mxu0 0.0
          %1442 = vmatprep.subr.mxu0 0.0
          %1443 = vmatpush1.msra.mxu0 0.0
          %1444 = vmatprep.subr.mxu0 0.0
          %1445 = vmatpush1.msra.mxu0 0.0
          %1446 = vmatprep.subr.mxu0 0.0
          %1447 = vmatpush1.msra.mxu0 0.0
          %1448 = vmatprep.subr.mxu0 0.0
          %1449 = vmatpush1.msra.mxu0 0.0
          %1450 = vmatprep.subr.mxu0 0.0
          %1451 = vmatpush1.msra.mxu0 0.0
          %1452 = vmatprep.subr.mxu0 0.0
          %1453 = vmatpush1.msra.mxu0 0.0
          %1454 = vmatprep.mubr.f32.mxu0 0.0
          %1455 = vmatmul.mubr.f32.gmra.mrb[0].mxu0 %v1382
          %v1456 = vpop.f32.mrb[0].mxu0
          %v1457 = vadd.f32 0.0, %v1456
          %v1458 = vpop.f32.mrb[0].mxu0
          %v1459 = vadd.f32 0.0, %v1458
          %1460 = vdwg.mxu0
          %v1461 = vadd.f32 %v1301, %v1457
          %v1462 = vadd.f32 %v1302, %v1459
          %v1463 = vld [vmem:[#allocation2 + $0xb] sm:$0x1]
          %v1464 = vld [vmem:[#allocation2 + $0xf] sm:$0x1]
          %v1465 = vadd.f32 %v1463, %v1464
          %v1467 = vsel %vm319, %v1465, 0
          %1469 = vmatprep.subr.mxu0 0.0
          %1470 = vmatpush1.msra.mxu0 %v338
          %1471 = vmatprep.subr.mxu0 0.0
          %1472 = vmatpush1.msra.mxu0 %v339
          %1473 = vmatprep.subr.mxu0 0.0
          %1474 = vmatpush1.msra.mxu0 %v340
          %1475 = vmatprep.subr.mxu0 0.0
          %1476 = vmatpush1.msra.mxu0 %v341
          %1477 = vmatprep.subr.mxu0 0.0
          %1478 = vmatpush1.msra.mxu0 0.0
          %1479 = vmatprep.subr.mxu0 0.0
          %1480 = vmatpush1.msra.mxu0 0.0
          %1481 = vmatprep.subr.mxu0 0.0
          %1482 = vmatpush1.msra.mxu0 0.0
          %1483 = vmatprep.subr.mxu0 0.0
          %1484 = vmatpush1.msra.mxu0 0.0
          %1485 = vmatprep.subr.mxu0 0.0
          %1486 = vmatpush1.msra.mxu0 0.0
          %1487 = vmatprep.subr.mxu0 0.0
          %1488 = vmatpush1.msra.mxu0 0.0
          %1489 = vmatprep.subr.mxu0 0.0
          %1490 = vmatpush1.msra.mxu0 0.0
          %1491 = vmatprep.subr.mxu0 0.0
          %1492 = vmatpush1.msra.mxu0 0.0
          %1493 = vmatprep.subr.mxu0 0.0
          %1494 = vmatpush1.msra.mxu0 0.0
          %1495 = vmatprep.subr.mxu0 0.0
          %1496 = vmatpush1.msra.mxu0 0.0
          %1497 = vmatprep.subr.mxu0 0.0
          %1498 = vmatpush1.msra.mxu0 0.0
          %1499 = vmatprep.subr.mxu0 0.0
          %1500 = vmatpush1.msra.mxu0 0.0
          %1501 = vmatprep.subr.mxu0 0.0
          %1502 = vmatpush1.msra.mxu0 0.0
          %1503 = vmatprep.subr.mxu0 0.0
          %1504 = vmatpush1.msra.mxu0 0.0
          %1505 = vmatprep.subr.mxu0 0.0
          %1506 = vmatpush1.msra.mxu0 0.0
          %1507 = vmatprep.subr.mxu0 0.0
          %1508 = vmatpush1.msra.mxu0 0.0
          %1509 = vmatprep.subr.mxu0 0.0
          %1510 = vmatpush1.msra.mxu0 0.0
          %1511 = vmatprep.subr.mxu0 0.0
          %1512 = vmatpush1.msra.mxu0 0.0
          %1513 = vmatprep.subr.mxu0 0.0
          %1514 = vmatpush1.msra.mxu0 0.0
          %1515 = vmatprep.subr.mxu0 0.0
          %1516 = vmatpush1.msra.mxu0 0.0
          %1517 = vmatprep.subr.mxu0 0.0
          %1518 = vmatpush1.msra.mxu0 0.0
          %1519 = vmatprep.subr.mxu0 0.0
          %1520 = vmatpush1.msra.mxu0 0.0
          %1521 = vmatprep.subr.mxu0 0.0
          %1522 = vmatpush1.msra.mxu0 0.0
          %1523 = vmatprep.subr.mxu0 0.0
          %1524 = vmatpush1.msra.mxu0 0.0
          %1525 = vmatprep.subr.mxu0 0.0
          %1526 = vmatpush1.msra.mxu0 0.0
          %1527 = vmatprep.subr.mxu0 0.0
          %1528 = vmatpush1.msra.mxu0 0.0
          %1529 = vmatprep.subr.mxu0 0.0
          %1530 = vmatpush1.msra.mxu0 0.0
          %1531 = vmatprep.subr.mxu0 0.0
          %1532 = vmatpush1.msra.mxu0 0.0
          %1533 = vmatprep.mubr.f32.mxu0 0.0
          %1534 = vmatmul.mubr.f32.gmra.mrb[0].mxu0 %v1467
          %v1535 = vpop.f32.mrb[0].mxu0
          %v1536 = vadd.f32 0.0, %v1535
          %v1537 = vpop.f32.mrb[0].mxu0
          %1538 = vdwg.mxu0
          %v1539 = vld [vmem:[%s2 + $0x30] sm:$0xf0]
          %v1540 = vld [vmem:[%s2 + $0x38] sm:$0xf0]
          %v1543 = vrot.slane %v1539, 4
          %v1544 = vrot.slane %v1540, 4
          %v1546 = vsel %vm499, %v1536, 0
          %v1548 = vsel %vm503, %v1543, 0
          %v1550 = vsel %vm503, %v1544, 0
          %1552 = vmatprep.subr.mxu0 %v1550
          %1553 = vmatpush1.msra.mxu0 %v1548
          %1554 = vmatprep.subr.mxu0 0.0
          %1555 = vmatpush1.msra.mxu0 0.0
          %1556 = vmatprep.subr.mxu0 0.0
          %1557 = vmatpush1.msra.mxu0 0.0
          %1558 = vmatprep.subr.mxu0 0.0
          %1559 = vmatpush1.msra.mxu0 0.0
          %1560 = vmatprep.subr.mxu0 0.0
          %1561 = vmatpush1.msra.mxu0 0.0
          %1562 = vmatprep.subr.mxu0 0.0
          %1563 = vmatpush1.msra.mxu0 0.0
          %1564 = vmatprep.subr.mxu0 0.0
          %1565 = vmatpush1.msra.mxu0 0.0
          %1566 = vmatprep.subr.mxu0 0.0
          %1567 = vmatpush1.msra.mxu0 0.0
          %1568 = vmatprep.subr.mxu0 0.0
          %1569 = vmatpush1.msra.mxu0 0.0
          %1570 = vmatprep.subr.mxu0 0.0
          %1571 = vmatpush1.msra.mxu0 0.0
          %1572 = vmatprep.subr.mxu0 0.0
          %1573 = vmatpush1.msra.mxu0 0.0
          %1574 = vmatprep.subr.mxu0 0.0
          %1575 = vmatpush1.msra.mxu0 0.0
          %1576 = vmatprep.subr.mxu0 0.0
          %1577 = vmatpush1.msra.mxu0 0.0
          %1578 = vmatprep.subr.mxu0 0.0
          %1579 = vmatpush1.msra.mxu0 0.0
          %1580 = vmatprep.subr.mxu0 0.0
          %1581 = vmatpush1.msra.mxu0 0.0
          %1582 = vmatprep.subr.mxu0 0.0
          %1583 = vmatpush1.msra.mxu0 0.0
          %1584 = vmatprep.subr.mxu0 0.0
          %1585 = vmatpush1.msra.mxu0 0.0
          %1586 = vmatprep.subr.mxu0 0.0
          %1587 = vmatpush1.msra.mxu0 0.0
          %1588 = vmatprep.subr.mxu0 0.0
          %1589 = vmatpush1.msra.mxu0 0.0
          %1590 = vmatprep.subr.mxu0 0.0
          %1591 = vmatpush1.msra.mxu0 0.0
          %1592 = vmatprep.subr.mxu0 0.0
          %1593 = vmatpush1.msra.mxu0 0.0
          %1594 = vmatprep.subr.mxu0 0.0
          %1595 = vmatpush1.msra.mxu0 0.0
          %1596 = vmatprep.subr.mxu0 0.0
          %1597 = vmatpush1.msra.mxu0 0.0
          %1598 = vmatprep.subr.mxu0 0.0
          %1599 = vmatpush1.msra.mxu0 0.0
          %1600 = vmatprep.subr.mxu0 0.0
          %1601 = vmatpush1.msra.mxu0 0.0
          %1602 = vmatprep.subr.mxu0 0.0
          %1603 = vmatpush1.msra.mxu0 0.0
          %1604 = vmatprep.subr.mxu0 0.0
          %1605 = vmatpush1.msra.mxu0 0.0
          %1606 = vmatprep.subr.mxu0 0.0
          %1607 = vmatpush1.msra.mxu0 0.0
          %1608 = vmatprep.subr.mxu0 0.0
          %1609 = vmatpush1.msra.mxu0 0.0
          %1610 = vmatprep.subr.mxu0 0.0
          %1611 = vmatpush1.msra.mxu0 0.0
          %1612 = vmatprep.subr.mxu0 0.0
          %1613 = vmatpush1.msra.mxu0 0.0
          %1614 = vmatprep.subr.mxu0 0.0
          %1615 = vmatpush1.msra.mxu0 0.0
          %1616 = vmatprep.mubr.f32.mxu0 0.0
          %1617 = vmatmul.mubr.f32.gmra.mrb[0].mxu0 %v1546
          %v1618 = vpop.f32.mrb[0].mxu0
          %v1619 = vadd.f32 0.0, %v1618
          %v1620 = vpop.f32.mrb[0].mxu0
          %v1621 = vadd.f32 0.0, %v1620
          %1622 = vdwg.mxu0
          %v1623 = vadd.f32 %v1461, %v1619
          %v1624 = vadd.f32 %v1462, %v1621
          %v1625 = vld [vmem:[#allocation2 + $0x10] sm:$0x1]
          %v1626 = vld [vmem:[#allocation2 + $0x14] sm:$0x1]
          %v1627 = vadd.f32 %v1625, %v1626
          %v1629 = vsel %vm319, %v1627, 0
          %1631 = vmatprep.subr.mxu0 0.0
          %1632 = vmatpush1.msra.mxu0 %v338
          %1633 = vmatprep.subr.mxu0 0.0
          %1634 = vmatpush1.msra.mxu0 %v339
          %1635 = vmatprep.subr.mxu0 0.0
          %1636 = vmatpush1.msra.mxu0 %v340
          %1637 = vmatprep.subr.mxu0 0.0
          %1638 = vmatpush1.msra.mxu0 %v341
          %1639 = vmatprep.subr.mxu0 0.0
          %1640 = vmatpush1.msra.mxu0 0.0
          %1641 = vmatprep.subr.mxu0 0.0
          %1642 = vmatpush1.msra.mxu0 0.0
          %1643 = vmatprep.subr.mxu0 0.0
          %1644 = vmatpush1.msra.mxu0 0.0
          %1645 = vmatprep.subr.mxu0 0.0
          %1646 = vmatpush1.msra.mxu0 0.0
          %1647 = vmatprep.subr.mxu0 0.0
          %1648 = vmatpush1.msra.mxu0 0.0
          %1649 = vmatprep.subr.mxu0 0.0
          %1650 = vmatpush1.msra.mxu0 0.0
          %1651 = vmatprep.subr.mxu0 0.0
          %1652 = vmatpush1.msra.mxu0 0.0
          %1653 = vmatprep.subr.mxu0 0.0
          %1654 = vmatpush1.msra.mxu0 0.0
          %1655 = vmatprep.subr.mxu0 0.0
          %1656 = vmatpush1.msra.mxu0 0.0
          %1657 = vmatprep.subr.mxu0 0.0
          %1658 = vmatpush1.msra.mxu0 0.0
          %1659 = vmatprep.subr.mxu0 0.0
          %1660 = vmatpush1.msra.mxu0 0.0
          %1661 = vmatprep.subr.mxu0 0.0
          %1662 = vmatpush1.msra.mxu0 0.0
          %1663 = vmatprep.subr.mxu0 0.0
          %1664 = vmatpush1.msra.mxu0 0.0
          %1665 = vmatprep.subr.mxu0 0.0
          %1666 = vmatpush1.msra.mxu0 0.0
          %1667 = vmatprep.subr.mxu0 0.0
          %1668 = vmatpush1.msra.mxu0 0.0
          %1669 = vmatprep.subr.mxu0 0.0
          %1670 = vmatpush1.msra.mxu0 0.0
          %1671 = vmatprep.subr.mxu0 0.0
          %1672 = vmatpush1.msra.mxu0 0.0
          %1673 = vmatprep.subr.mxu0 0.0
          %1674 = vmatpush1.msra.mxu0 0.0
          %1675 = vmatprep.subr.mxu0 0.0
          %1676 = vmatpush1.msra.mxu0 0.0
          %1677 = vmatprep.subr.mxu0 0.0
          %1678 = vmatpush1.msra.mxu0 0.0
          %1679 = vmatprep.subr.mxu0 0.0
          %1680 = vmatpush1.msra.mxu0 0.0
          %1681 = vmatprep.subr.mxu0 0.0
          %1682 = vmatpush1.msra.mxu0 0.0
          %1683 = vmatprep.subr.mxu0 0.0
          %1684 = vmatpush1.msra.mxu0 0.0
          %1685 = vmatprep.subr.mxu0 0.0
          %1686 = vmatpush1.msra.mxu0 0.0
          %1687 = vmatprep.subr.mxu0 0.0
          %1688 = vmatpush1.msra.mxu0 0.0
          %1689 = vmatprep.subr.mxu0 0.0
          %1690 = vmatpush1.msra.mxu0 0.0
          %1691 = vmatprep.subr.mxu0 0.0
          %1692 = vmatpush1.msra.mxu0 0.0
          %1693 = vmatprep.subr.mxu0 0.0
          %1694 = vmatpush1.msra.mxu0 0.0
          %1695 = vmatprep.mubr.f32.mxu0 0.0
          %1696 = vmatmul.mubr.f32.gmra.mrb[0].mxu0 %v1629
          %v1697 = vpop.f32.mrb[0].mxu0
          %v1698 = vadd.f32 0.0, %v1697
          %v1699 = vpop.f32.mrb[0].mxu0
          %1700 = vdwg.mxu0
          %v1701 = vld [vmem:[%s2 + $0x40] sm:$0xf]
          %v1702 = vld [vmem:[%s2 + $0x48] sm:$0xf]
          %v1704 = vsel %vm499, %v1698, 0
          %v1707 = vsel %vm503, %v1701, 0
          %v1710 = vsel %vm503, %v1702, 0
          %1712 = vmatprep.subr.mxu0 %v1710
          %1713 = vmatpush1.msra.mxu0 %v1707
          %1714 = vmatprep.subr.mxu0 0.0
          %1715 = vmatpush1.msra.mxu0 0.0
          %1716 = vmatprep.subr.mxu0 0.0
          %1717 = vmatpush1.msra.mxu0 0.0
          %1718 = vmatprep.subr.mxu0 0.0
          %1719 = vmatpush1.msra.mxu0 0.0
          %1720 = vmatprep.subr.mxu0 0.0
          %1721 = vmatpush1.msra.mxu0 0.0
          %1722 = vmatprep.subr.mxu0 0.0
          %1723 = vmatpush1.msra.mxu0 0.0
          %1724 = vmatprep.subr.mxu0 0.0
          %1725 = vmatpush1.msra.mxu0 0.0
          %1726 = vmatprep.subr.mxu0 0.0
          %1727 = vmatpush1.msra.mxu0 0.0
          %1728 = vmatprep.subr.mxu0 0.0
          %1729 = vmatpush1.msra.mxu0 0.0
          %1730 = vmatprep.subr.mxu0 0.0
          %1731 = vmatpush1.msra.mxu0 0.0
          %1732 = vmatprep.subr.mxu0 0.0
          %1733 = vmatpush1.msra.mxu0 0.0
          %1734 = vmatprep.subr.mxu0 0.0
          %1735 = vmatpush1.msra.mxu0 0.0
          %1736 = vmatprep.subr.mxu0 0.0
          %1737 = vmatpush1.msra.mxu0 0.0
          %1738 = vmatprep.subr.mxu0 0.0
          %1739 = vmatpush1.msra.mxu0 0.0
          %1740 = vmatprep.subr.mxu0 0.0
          %1741 = vmatpush1.msra.mxu0 0.0
          %1742 = vmatprep.subr.mxu0 0.0
          %1743 = vmatpush1.msra.mxu0 0.0
          %1744 = vmatprep.subr.mxu0 0.0
          %1745 = vmatpush1.msra.mxu0 0.0
          %1746 = vmatprep.subr.mxu0 0.0
          %1747 = vmatpush1.msra.mxu0 0.0
          %1748 = vmatprep.subr.mxu0 0.0
          %1749 = vmatpush1.msra.mxu0 0.0
          %1750 = vmatprep.subr.mxu0 0.0
          %1751 = vmatpush1.msra.mxu0 0.0
          %1752 = vmatprep.subr.mxu0 0.0
          %1753 = vmatpush1.msra.mxu0 0.0
          %1754 = vmatprep.subr.mxu0 0.0
          %1755 = vmatpush1.msra.mxu0 0.0
          %1756 = vmatprep.subr.mxu0 0.0
          %1757 = vmatpush1.msra.mxu0 0.0
          %1758 = vmatprep.subr.mxu0 0.0
          %1759 = vmatpush1.msra.mxu0 0.0
          %1760 = vmatprep.subr.mxu0 0.0
          %1761 = vmatpush1.msra.mxu0 0.0
          %1762 = vmatprep.subr.mxu0 0.0
          %1763 = vmatpush1.msra.mxu0 0.0
          %1764 = vmatprep.subr.mxu0 0.0
          %1765 = vmatpush1.msra.mxu0 0.0
          %1766 = vmatprep.subr.mxu0 0.0
          %1767 = vmatpush1.msra.mxu0 0.0
          %1768 = vmatprep.subr.mxu0 0.0
          %1769 = vmatpush1.msra.mxu0 0.0
          %1770 = vmatprep.subr.mxu0 0.0
          %1771 = vmatpush1.msra.mxu0 0.0
          %1772 = vmatprep.subr.mxu0 0.0
          %1773 = vmatpush1.msra.mxu0 0.0
          %1774 = vmatprep.subr.mxu0 0.0
          %1775 = vmatpush1.msra.mxu0 0.0
          %1776 = vmatprep.mubr.f32.mxu0 0.0
          %1777 = vmatmul.mubr.f32.gmra.mrb[0].mxu0 %v1704
          %v1778 = vpop.f32.mrb[0].mxu0
          %v1779 = vadd.f32 0.0, %v1778
          %v1780 = vpop.f32.mrb[0].mxu0
          %v1781 = vadd.f32 0.0, %v1780
          %1782 = vdwg.mxu0
          %v1783 = vadd.f32 %v1623, %v1779
          %v1784 = vadd.f32 %v1624, %v1781
          %v1785 = vld [vmem:[#allocation2 + $0x11] sm:$0x1]
          %v1786 = vld [vmem:[#allocation2 + $0x15] sm:$0x1]
          %v1787 = vadd.f32 %v1785, %v1786
          %v1789 = vsel %vm319, %v1787, 0
          %1791 = vmatprep.subr.mxu0 0.0
          %1792 = vmatpush1.msra.mxu0 %v338
          %1793 = vmatprep.subr.mxu0 0.0
          %1794 = vmatpush1.msra.mxu0 %v339
          %1795 = vmatprep.subr.mxu0 0.0
          %1796 = vmatpush1.msra.mxu0 %v340
          %1797 = vmatprep.subr.mxu0 0.0
          %1798 = vmatpush1.msra.mxu0 %v341
          %1799 = vmatprep.subr.mxu0 0.0
          %1800 = vmatpush1.msra.mxu0 0.0
          %1801 = vmatprep.subr.mxu0 0.0
          %1802 = vmatpush1.msra.mxu0 0.0
          %1803 = vmatprep.subr.mxu0 0.0
          %1804 = vmatpush1.msra.mxu0 0.0
          %1805 = vmatprep.subr.mxu0 0.0
          %1806 = vmatpush1.msra.mxu0 0.0
          %1807 = vmatprep.subr.mxu0 0.0
          %1808 = vmatpush1.msra.mxu0 0.0
          %1809 = vmatprep.subr.mxu0 0.0
          %1810 = vmatpush1.msra.mxu0 0.0
          %1811 = vmatprep.subr.mxu0 0.0
          %1812 = vmatpush1.msra.mxu0 0.0
          %1813 = vmatprep.subr.mxu0 0.0
          %1814 = vmatpush1.msra.mxu0 0.0
          %1815 = vmatprep.subr.mxu0 0.0
          %1816 = vmatpush1.msra.mxu0 0.0
          %1817 = vmatprep.subr.mxu0 0.0
          %1818 = vmatpush1.msra.mxu0 0.0
          %1819 = vmatprep.subr.mxu0 0.0
          %1820 = vmatpush1.msra.mxu0 0.0
          %1821 = vmatprep.subr.mxu0 0.0
          %1822 = vmatpush1.msra.mxu0 0.0
          %1823 = vmatprep.subr.mxu0 0.0
          %1824 = vmatpush1.msra.mxu0 0.0
          %1825 = vmatprep.subr.mxu0 0.0
          %1826 = vmatpush1.msra.mxu0 0.0
          %1827 = vmatprep.subr.mxu0 0.0
          %1828 = vmatpush1.msra.mxu0 0.0
          %1829 = vmatprep.subr.mxu0 0.0
          %1830 = vmatpush1.msra.mxu0 0.0
          %1831 = vmatprep.subr.mxu0 0.0
          %1832 = vmatpush1.msra.mxu0 0.0
          %1833 = vmatprep.subr.mxu0 0.0
          %1834 = vmatpush1.msra.mxu0 0.0
          %1835 = vmatprep.subr.mxu0 0.0
          %1836 = vmatpush1.msra.mxu0 0.0
          %1837 = vmatprep.subr.mxu0 0.0
          %1838 = vmatpush1.msra.mxu0 0.0
          %1839 = vmatprep.subr.mxu0 0.0
          %1840 = vmatpush1.msra.mxu0 0.0
          %1841 = vmatprep.subr.mxu0 0.0
          %1842 = vmatpush1.msra.mxu0 0.0
          %1843 = vmatprep.subr.mxu0 0.0
          %1844 = vmatpush1.msra.mxu0 0.0
          %1845 = vmatprep.subr.mxu0 0.0
          %1846 = vmatpush1.msra.mxu0 0.0
          %1847 = vmatprep.subr.mxu0 0.0
          %1848 = vmatpush1.msra.mxu0 0.0
          %1849 = vmatprep.subr.mxu0 0.0
          %1850 = vmatpush1.msra.mxu0 0.0
          %1851 = vmatprep.subr.mxu0 0.0
          %1852 = vmatpush1.msra.mxu0 0.0
          %1853 = vmatprep.subr.mxu0 0.0
          %1854 = vmatpush1.msra.mxu0 0.0
          %1855 = vmatprep.mubr.f32.mxu0 0.0
          %1856 = vmatmul.mubr.f32.gmra.mrb[0].mxu0 %v1789
          %v1857 = vpop.f32.mrb[0].mxu0
          %v1858 = vadd.f32 0.0, %v1857
          %v1859 = vpop.f32.mrb[0].mxu0
          %1860 = vdwg.mxu0
          %v1861 = vld [vmem:[%s2 + $0x40] sm:$0xf0]
          %v1862 = vld [vmem:[%s2 + $0x48] sm:$0xf0]
          %v1865 = vrot.slane %v1861, 4
          %v1866 = vrot.slane %v1862, 4
          %v1868 = vsel %vm499, %v1858, 0
          %v1870 = vsel %vm503, %v1865, 0
          %v1872 = vsel %vm503, %v1866, 0
          %1874 = vmatprep.subr.mxu0 %v1872
          %1875 = vmatpush1.msra.mxu0 %v1870
          %1876 = vmatprep.subr.mxu0 0.0
          %1877 = vmatpush1.msra.mxu0 0.0
          %1878 = vmatprep.subr.mxu0 0.0
          %1879 = vmatpush1.msra.mxu0 0.0
          %1880 = vmatprep.subr.mxu0 0.0
          %1881 = vmatpush1.msra.mxu0 0.0
          %1882 = vmatprep.subr.mxu0 0.0
          %1883 = vmatpush1.msra.mxu0 0.0
          %1884 = vmatprep.subr.mxu0 0.0
          %1885 = vmatpush1.msra.mxu0 0.0
          %1886 = vmatprep.subr.mxu0 0.0
          %1887 = vmatpush1.msra.mxu0 0.0
          %1888 = vmatprep.subr.mxu0 0.0
          %1889 = vmatpush1.msra.mxu0 0.0
          %1890 = vmatprep.subr.mxu0 0.0
          %1891 = vmatpush1.msra.mxu0 0.0
          %1892 = vmatprep.subr.mxu0 0.0
          %1893 = vmatpush1.msra.mxu0 0.0
          %1894 = vmatprep.subr.mxu0 0.0
          %1895 = vmatpush1.msra.mxu0 0.0
          %1896 = vmatprep.subr.mxu0 0.0
          %1897 = vmatpush1.msra.mxu0 0.0
          %1898 = vmatprep.subr.mxu0 0.0
          %1899 = vmatpush1.msra.mxu0 0.0
          %1900 = vmatprep.subr.mxu0 0.0
          %1901 = vmatpush1.msra.mxu0 0.0
          %1902 = vmatprep.subr.mxu0 0.0
          %1903 = vmatpush1.msra.mxu0 0.0
          %1904 = vmatprep.subr.mxu0 0.0
          %1905 = vmatpush1.msra.mxu0 0.0
          %1906 = vmatprep.subr.mxu0 0.0
          %1907 = vmatpush1.msra.mxu0 0.0
          %1908 = vmatprep.subr.mxu0 0.0
          %1909 = vmatpush1.msra.mxu0 0.0
          %1910 = vmatprep.subr.mxu0 0.0
          %1911 = vmatpush1.msra.mxu0 0.0
          %1912 = vmatprep.subr.mxu0 0.0
          %1913 = vmatpush1.msra.mxu0 0.0
          %1914 = vmatprep.subr.mxu0 0.0
          %1915 = vmatpush1.msra.mxu0 0.0
          %1916 = vmatprep.subr.mxu0 0.0
          %1917 = vmatpush1.msra.mxu0 0.0
          %1918 = vmatprep.subr.mxu0 0.0
          %1919 = vmatpush1.msra.mxu0 0.0
          %1920 = vmatprep.subr.mxu0 0.0
          %1921 = vmatpush1.msra.mxu0 0.0
          %1922 = vmatprep.subr.mxu0 0.0
          %1923 = vmatpush1.msra.mxu0 0.0
          %1924 = vmatprep.subr.mxu0 0.0
          %1925 = vmatpush1.msra.mxu0 0.0
          %1926 = vmatprep.subr.mxu0 0.0
          %1927 = vmatpush1.msra.mxu0 0.0
          %1928 = vmatprep.subr.mxu0 0.0
          %1929 = vmatpush1.msra.mxu0 0.0
          %1930 = vmatprep.subr.mxu0 0.0
          %1931 = vmatpush1.msra.mxu0 0.0
          %1932 = vmatprep.subr.mxu0 0.0
          %1933 = vmatpush1.msra.mxu0 0.0
          %1934 = vmatprep.subr.mxu0 0.0
          %1935 = vmatpush1.msra.mxu0 0.0
          %1936 = vmatprep.subr.mxu0 0.0
          %1937 = vmatpush1.msra.mxu0 0.0
          %1938 = vmatprep.mubr.f32.mxu0 0.0
          %1939 = vmatmul.mubr.f32.gmra.mrb[0].mxu0 %v1868
          %v1940 = vpop.f32.mrb[0].mxu0
          %v1941 = vadd.f32 0.0, %v1940
          %v1942 = vpop.f32.mrb[0].mxu0
          %v1943 = vadd.f32 0.0, %v1942
          %1944 = vdwg.mxu0
          %v1945 = vadd.f32 %v1783, %v1941
          %v1946 = vadd.f32 %v1784, %v1943
          %v1947 = vld [vmem:[#allocation2 + $0x12] sm:$0x1]
          %v1948 = vld [vmem:[#allocation2 + $0x16] sm:$0x1]
          %v1949 = vadd.f32 %v1947, %v1948
          %v1951 = vsel %vm319, %v1949, 0
          %1953 = vmatprep.subr.mxu0 0.0
          %1954 = vmatpush1.msra.mxu0 %v338
          %1955 = vmatprep.subr.mxu0 0.0
          %1956 = vmatpush1.msra.mxu0 %v339
          %1957 = vmatprep.subr.mxu0 0.0
          %1958 = vmatpush1.msra.mxu0 %v340
          %1959 = vmatprep.subr.mxu0 0.0
          %1960 = vmatpush1.msra.mxu0 %v341
          %1961 = vmatprep.subr.mxu0 0.0
          %1962 = vmatpush1.msra.mxu0 0.0
          %1963 = vmatprep.subr.mxu0 0.0
          %1964 = vmatpush1.msra.mxu0 0.0
          %1965 = vmatprep.subr.mxu0 0.0
          %1966 = vmatpush1.msra.mxu0 0.0
          %1967 = vmatprep.subr.mxu0 0.0
          %1968 = vmatpush1.msra.mxu0 0.0
          %1969 = vmatprep.subr.mxu0 0.0
          %1970 = vmatpush1.msra.mxu0 0.0
          %1971 = vmatprep.subr.mxu0 0.0
          %1972 = vmatpush1.msra.mxu0 0.0
          %1973 = vmatprep.subr.mxu0 0.0
          %1974 = vmatpush1.msra.mxu0 0.0
          %1975 = vmatprep.subr.mxu0 0.0
          %1976 = vmatpush1.msra.mxu0 0.0
          %1977 = vmatprep.subr.mxu0 0.0
          %1978 = vmatpush1.msra.mxu0 0.0
          %1979 = vmatprep.subr.mxu0 0.0
          %1980 = vmatpush1.msra.mxu0 0.0
          %1981 = vmatprep.subr.mxu0 0.0
          %1982 = vmatpush1.msra.mxu0 0.0
          %1983 = vmatprep.subr.mxu0 0.0
          %1984 = vmatpush1.msra.mxu0 0.0
          %1985 = vmatprep.subr.mxu0 0.0
          %1986 = vmatpush1.msra.mxu0 0.0
          %1987 = vmatprep.subr.mxu0 0.0
          %1988 = vmatpush1.msra.mxu0 0.0
          %1989 = vmatprep.subr.mxu0 0.0
          %1990 = vmatpush1.msra.mxu0 0.0
          %1991 = vmatprep.subr.mxu0 0.0
          %1992 = vmatpush1.msra.mxu0 0.0
          %1993 = vmatprep.subr.mxu0 0.0
          %1994 = vmatpush1.msra.mxu0 0.0
          %1995 = vmatprep.subr.mxu0 0.0
          %1996 = vmatpush1.msra.mxu0 0.0
          %1997 = vmatprep.subr.mxu0 0.0
          %1998 = vmatpush1.msra.mxu0 0.0
          %1999 = vmatprep.subr.mxu0 0.0
          %2000 = vmatpush1.msra.mxu0 0.0
          %2001 = vmatprep.subr.mxu0 0.0
          %2002 = vmatpush1.msra.mxu0 0.0
          %2003 = vmatprep.subr.mxu0 0.0
          %2004 = vmatpush1.msra.mxu0 0.0
          %2005 = vmatprep.subr.mxu0 0.0
          %2006 = vmatpush1.msra.mxu0 0.0
          %2007 = vmatprep.subr.mxu0 0.0
          %2008 = vmatpush1.msra.mxu0 0.0
          %2009 = vmatprep.subr.mxu0 0.0
          %2010 = vmatpush1.msra.mxu0 0.0
          %2011 = vmatprep.subr.mxu0 0.0
          %2012 = vmatpush1.msra.mxu0 0.0
          %2013 = vmatprep.subr.mxu0 0.0
          %2014 = vmatpush1.msra.mxu0 0.0
          %2015 = vmatprep.subr.mxu0 0.0
          %2016 = vmatpush1.msra.mxu0 0.0
          %2017 = vmatprep.mubr.f32.mxu0 0.0
          %2018 = vmatmul.mubr.f32.gmra.mrb[0].mxu0 %v1951
          %v2019 = vpop.f32.mrb[0].mxu0
          %v2020 = vadd.f32 0.0, %v2019
          %v2021 = vpop.f32.mrb[0].mxu0
          %2022 = vdwg.mxu0
          %v2023 = vld [vmem:[%s2 + $0x50] sm:$0xf]
          %v2024 = vld [vmem:[%s2 + $0x58] sm:$0xf]
          %v2026 = vsel %vm499, %v2020, 0
          %v2029 = vsel %vm503, %v2023, 0
          %v2032 = vsel %vm503, %v2024, 0
          %2034 = vmatprep.subr.mxu0 %v2032
          %2035 = vmatpush1.msra.mxu0 %v2029
          %2036 = vmatprep.subr.mxu0 0.0
          %2037 = vmatpush1.msra.mxu0 0.0
          %2038 = vmatprep.subr.mxu0 0.0
          %2039 = vmatpush1.msra.mxu0 0.0
          %2040 = vmatprep.subr.mxu0 0.0
          %2041 = vmatpush1.msra.mxu0 0.0
          %2042 = vmatprep.subr.mxu0 0.0
          %2043 = vmatpush1.msra.mxu0 0.0
          %2044 = vmatprep.subr.mxu0 0.0
          %2045 = vmatpush1.msra.mxu0 0.0
          %2046 = vmatprep.subr.mxu0 0.0
          %2047 = vmatpush1.msra.mxu0 0.0
          %2048 = vmatprep.subr.mxu0 0.0
          %2049 = vmatpush1.msra.mxu0 0.0
          %2050 = vmatprep.subr.mxu0 0.0
          %2051 = vmatpush1.msra.mxu0 0.0
          %2052 = vmatprep.subr.mxu0 0.0
          %2053 = vmatpush1.msra.mxu0 0.0
          %2054 = vmatprep.subr.mxu0 0.0
          %2055 = vmatpush1.msra.mxu0 0.0
          %2056 = vmatprep.subr.mxu0 0.0
          %2057 = vmatpush1.msra.mxu0 0.0
          %2058 = vmatprep.subr.mxu0 0.0
          %2059 = vmatpush1.msra.mxu0 0.0
          %2060 = vmatprep.subr.mxu0 0.0
          %2061 = vmatpush1.msra.mxu0 0.0
          %2062 = vmatprep.subr.mxu0 0.0
          %2063 = vmatpush1.msra.mxu0 0.0
          %2064 = vmatprep.subr.mxu0 0.0
          %2065 = vmatpush1.msra.mxu0 0.0
          %2066 = vmatprep.subr.mxu0 0.0
          %2067 = vmatpush1.msra.mxu0 0.0
          %2068 = vmatprep.subr.mxu0 0.0
          %2069 = vmatpush1.msra.mxu0 0.0
          %2070 = vmatprep.subr.mxu0 0.0
          %2071 = vmatpush1.msra.mxu0 0.0
          %2072 = vmatprep.subr.mxu0 0.0
          %2073 = vmatpush1.msra.mxu0 0.0
          %2074 = vmatprep.subr.mxu0 0.0
          %2075 = vmatpush1.msra.mxu0 0.0
          %2076 = vmatprep.subr.mxu0 0.0
          %2077 = vmatpush1.msra.mxu0 0.0
          %2078 = vmatprep.subr.mxu0 0.0
          %2079 = vmatpush1.msra.mxu0 0.0
          %2080 = vmatprep.subr.mxu0 0.0
          %2081 = vmatpush1.msra.mxu0 0.0
          %2082 = vmatprep.subr.mxu0 0.0
          %2083 = vmatpush1.msra.mxu0 0.0
          %2084 = vmatprep.subr.mxu0 0.0
          %2085 = vmatpush1.msra.mxu0 0.0
          %2086 = vmatprep.subr.mxu0 0.0
          %2087 = vmatpush1.msra.mxu0 0.0
          %2088 = vmatprep.subr.mxu0 0.0
          %2089 = vmatpush1.msra.mxu0 0.0
          %2090 = vmatprep.subr.mxu0 0.0
          %2091 = vmatpush1.msra.mxu0 0.0
          %2092 = vmatprep.subr.mxu0 0.0
          %2093 = vmatpush1.msra.mxu0 0.0
          %2094 = vmatprep.subr.mxu0 0.0
          %2095 = vmatpush1.msra.mxu0 0.0
          %2096 = vmatprep.subr.mxu0 0.0
          %2097 = vmatpush1.msra.mxu0 0.0
          %2098 = vmatprep.mubr.f32.mxu0 0.0
          %2099 = vmatmul.mubr.f32.gmra.mrb[0].mxu0 %v2026
          %v2100 = vpop.f32.mrb[0].mxu0
          %v2101 = vadd.f32 0.0, %v2100
          %v2102 = vpop.f32.mrb[0].mxu0
          %v2103 = vadd.f32 0.0, %v2102
          %2104 = vdwg.mxu0
          %v2105 = vadd.f32 %v1945, %v2101
          %v2106 = vadd.f32 %v1946, %v2103
          %v2107 = vld [vmem:[#allocation2 + $0x13] sm:$0x1]
          %v2108 = vld [vmem:[#allocation2 + $0x17] sm:$0x1]
          %v2109 = vadd.f32 %v2107, %v2108
          %v2111 = vsel %vm319, %v2109, 0
          %2113 = vmatprep.subr.mxu0 0.0
          %2114 = vmatpush1.msra.mxu0 %v338
          %2115 = vmatprep.subr.mxu0 0.0
          %2116 = vmatpush1.msra.mxu0 %v339
          %2117 = vmatprep.subr.mxu0 0.0
          %2118 = vmatpush1.msra.mxu0 %v340
          %2119 = vmatprep.subr.mxu0 0.0
          %2120 = vmatpush1.msra.mxu0 %v341
          %2121 = vmatprep.subr.mxu0 0.0
          %2122 = vmatpush1.msra.mxu0 0.0
          %2123 = vmatprep.subr.mxu0 0.0
          %2124 = vmatpush1.msra.mxu0 0.0
          %2125 = vmatprep.subr.mxu0 0.0
          %2126 = vmatpush1.msra.mxu0 0.0
          %2127 = vmatprep.subr.mxu0 0.0
          %2128 = vmatpush1.msra.mxu0 0.0
          %2129 = vmatprep.subr.mxu0 0.0
          %2130 = vmatpush1.msra.mxu0 0.0
          %2131 = vmatprep.subr.mxu0 0.0
          %2132 = vmatpush1.msra.mxu0 0.0
          %2133 = vmatprep.subr.mxu0 0.0
          %2134 = vmatpush1.msra.mxu0 0.0
          %2135 = vmatprep.subr.mxu0 0.0
          %2136 = vmatpush1.msra.mxu0 0.0
          %2137 = vmatprep.subr.mxu0 0.0
          %2138 = vmatpush1.msra.mxu0 0.0
          %2139 = vmatprep.subr.mxu0 0.0
          %2140 = vmatpush1.msra.mxu0 0.0
          %2141 = vmatprep.subr.mxu0 0.0
          %2142 = vmatpush1.msra.mxu0 0.0
          %2143 = vmatprep.subr.mxu0 0.0
          %2144 = vmatpush1.msra.mxu0 0.0
          %2145 = vmatprep.subr.mxu0 0.0
          %2146 = vmatpush1.msra.mxu0 0.0
          %2147 = vmatprep.subr.mxu0 0.0
          %2148 = vmatpush1.msra.mxu0 0.0
          %2149 = vmatprep.subr.mxu0 0.0
          %2150 = vmatpush1.msra.mxu0 0.0
          %2151 = vmatprep.subr.mxu0 0.0
          %2152 = vmatpush1.msra.mxu0 0.0
          %2153 = vmatprep.subr.mxu0 0.0
          %2154 = vmatpush1.msra.mxu0 0.0
          %2155 = vmatprep.subr.mxu0 0.0
          %2156 = vmatpush1.msra.mxu0 0.0
          %2157 = vmatprep.subr.mxu0 0.0
          %2158 = vmatpush1.msra.mxu0 0.0
          %2159 = vmatprep.subr.mxu0 0.0
          %2160 = vmatpush1.msra.mxu0 0.0
          %2161 = vmatprep.subr.mxu0 0.0
          %2162 = vmatpush1.msra.mxu0 0.0
          %2163 = vmatprep.subr.mxu0 0.0
          %2164 = vmatpush1.msra.mxu0 0.0
          %2165 = vmatprep.subr.mxu0 0.0
          %2166 = vmatpush1.msra.mxu0 0.0
          %2167 = vmatprep.subr.mxu0 0.0
          %2168 = vmatpush1.msra.mxu0 0.0
          %2169 = vmatprep.subr.mxu0 0.0
          %2170 = vmatpush1.msra.mxu0 0.0
          %2171 = vmatprep.subr.mxu0 0.0
          %2172 = vmatpush1.msra.mxu0 0.0
          %2173 = vmatprep.subr.mxu0 0.0
          %2174 = vmatpush1.msra.mxu0 0.0
          %2175 = vmatprep.subr.mxu0 0.0
          %2176 = vmatpush1.msra.mxu0 0.0
          %2177 = vmatprep.mubr.f32.mxu0 0.0
          %2178 = vmatmul.mubr.f32.gmra.mrb[0].mxu0 %v2111
          %v2179 = vpop.f32.mrb[0].mxu0
          %v2180 = vadd.f32 0.0, %v2179
          %v2181 = vpop.f32.mrb[0].mxu0
          %2182 = vdwg.mxu0
          %v2183 = vld [vmem:[%s2 + $0x50] sm:$0xf0]
          %v2184 = vld [vmem:[%s2 + $0x58] sm:$0xf0]
          %v2187 = vrot.slane %v2183, 4
          %v2188 = vrot.slane %v2184, 4
          %v2190 = vsel %vm499, %v2180, 0
          %v2192 = vsel %vm503, %v2187, 0
          %v2194 = vsel %vm503, %v2188, 0
          %2196 = vmatprep.subr.mxu0 %v2194
          %2197 = vmatpush1.msra.mxu0 %v2192
          %2198 = vmatprep.subr.mxu0 0.0
          %2199 = vmatpush1.msra.mxu0 0.0
          %2200 = vmatprep.subr.mxu0 0.0
          %2201 = vmatpush1.msra.mxu0 0.0
          %2202 = vmatprep.subr.mxu0 0.0
          %2203 = vmatpush1.msra.mxu0 0.0
          %2204 = vmatprep.subr.mxu0 0.0
          %2205 = vmatpush1.msra.mxu0 0.0
          %2206 = vmatprep.subr.mxu0 0.0
          %2207 = vmatpush1.msra.mxu0 0.0
          %2208 = vmatprep.subr.mxu0 0.0
          %2209 = vmatpush1.msra.mxu0 0.0
          %2210 = vmatprep.subr.mxu0 0.0
          %2211 = vmatpush1.msra.mxu0 0.0
          %2212 = vmatprep.subr.mxu0 0.0
          %2213 = vmatpush1.msra.mxu0 0.0
          %2214 = vmatprep.subr.mxu0 0.0
          %2215 = vmatpush1.msra.mxu0 0.0
          %2216 = vmatprep.subr.mxu0 0.0
          %2217 = vmatpush1.msra.mxu0 0.0
          %2218 = vmatprep.subr.mxu0 0.0
          %2219 = vmatpush1.msra.mxu0 0.0
          %2220 = vmatprep.subr.mxu0 0.0
          %2221 = vmatpush1.msra.mxu0 0.0
          %2222 = vmatprep.subr.mxu0 0.0
          %2223 = vmatpush1.msra.mxu0 0.0
          %2224 = vmatprep.subr.mxu0 0.0
          %2225 = vmatpush1.msra.mxu0 0.0
          %2226 = vmatprep.subr.mxu0 0.0
          %2227 = vmatpush1.msra.mxu0 0.0
          %2228 = vmatprep.subr.mxu0 0.0
          %2229 = vmatpush1.msra.mxu0 0.0
          %2230 = vmatprep.subr.mxu0 0.0
          %2231 = vmatpush1.msra.mxu0 0.0
          %2232 = vmatprep.subr.mxu0 0.0
          %2233 = vmatpush1.msra.mxu0 0.0
          %2234 = vmatprep.subr.mxu0 0.0
          %2235 = vmatpush1.msra.mxu0 0.0
          %2236 = vmatprep.subr.mxu0 0.0
          %2237 = vmatpush1.msra.mxu0 0.0
          %2238 = vmatprep.subr.mxu0 0.0
          %2239 = vmatpush1.msra.mxu0 0.0
          %2240 = vmatprep.subr.mxu0 0.0
          %2241 = vmatpush1.msra.mxu0 0.0
          %2242 = vmatprep.subr.mxu0 0.0
          %2243 = vmatpush1.msra.mxu0 0.0
          %2244 = vmatprep.subr.mxu0 0.0
          %2245 = vmatpush1.msra.mxu0 0.0
          %2246 = vmatprep.subr.mxu0 0.0
          %2247 = vmatpush1.msra.mxu0 0.0
          %2248 = vmatprep.subr.mxu0 0.0
          %2249 = vmatpush1.msra.mxu0 0.0
          %2250 = vmatprep.subr.mxu0 0.0
          %2251 = vmatpush1.msra.mxu0 0.0
          %2252 = vmatprep.subr.mxu0 0.0
          %2253 = vmatpush1.msra.mxu0 0.0
          %2254 = vmatprep.subr.mxu0 0.0
          %2255 = vmatpush1.msra.mxu0 0.0
          %2256 = vmatprep.subr.mxu0 0.0
          %2257 = vmatpush1.msra.mxu0 0.0
          %2258 = vmatprep.subr.mxu0 0.0
          %2259 = vmatpush1.msra.mxu0 0.0
          %2260 = vmatprep.mubr.f32.mxu0 0.0
          %2261 = vmatmul.mubr.f32.gmra.mrb[0].mxu0 %v2190
          %v2262 = vpop.f32.mrb[0].mxu0
          %v2263 = vadd.f32 0.0, %v2262
          %v2264 = vpop.f32.mrb[0].mxu0
          %v2265 = vadd.f32 0.0, %v2264
          %2266 = vdwg.mxu0
          %v2267 = vadd.f32 %v2105, %v2263
          %v2268 = vadd.f32 %v2106, %v2265
          %v2269 = vmul.f32 %v2267, 0.015625
          %v2270 = vmul.f32 %v2268, 0.015625
          %v2271 = vld [vmem:[%s3] sm:$0x3]
          %v2273 = vlaneseq
          %v2274 = vshrl.u32 %v2273, 7
          %v2275 = vsub.s32 0, %v2274
          %v2276 = vrot.slane %v2271, %v2275
          %v2277 = vlaneseq
          %v2278 = vshrl.u32 %v2277, 7
          %v2279 = vsub.s32 1, %v2278
          %v2280 = vrot.slane %v2271, %v2279
          %v2283 = vadd.f32 %v2269, %v2276
          %v2284 = vadd.f32 %v2270, %v2280
          %v2285 = vpack.c.bf16 %v2283, %v2283
          %v2286 = vpack.c.bf16 %v2284, %v2284
          %v2287 = vld [vmem:[%s4] sm:$0xf]
          %v2288 = vld [vmem:[%s4 + $0x4] sm:$0xf]
          %v2289 = vld [vmem:[%s4 + $0x8] sm:$0xf]
          %v2290 = vld [vmem:[%s4 + $0xc] sm:$0xf]
          %v2291 = vld [vmem:[%s4 + $0x10] sm:$0xf]
          %v2292 = vld [vmem:[%s4 + $0x14] sm:$0xf]
          %v2293 = vld [vmem:[%s4 + $0x18] sm:$0xf]
          %v2294 = vld [vmem:[%s4 + $0x1c] sm:$0xf]
          %v2295 = vld [vmem:[%s4 + $0x20] sm:$0xf]
          %v2296 = vld [vmem:[%s4 + $0x24] sm:$0xf]
          %v2297 = vld [vmem:[%s4 + $0x28] sm:$0xf]
          %v2298 = vld [vmem:[%s4 + $0x2c] sm:$0xf]
          %v2299 = vld [vmem:[%s4 + $0x30] sm:$0xf]
          %v2300 = vld [vmem:[%s4 + $0x34] sm:$0xf]
          %v2301 = vld [vmem:[%s4 + $0x38] sm:$0xf]
          %v2302 = vld [vmem:[%s4 + $0x3c] sm:$0xf]
          %v2303 = vld [vmem:[%s4 + $0x40] sm:$0xf]
          %v2304 = vld [vmem:[%s4 + $0x44] sm:$0xf]
          %v2305 = vld [vmem:[%s4 + $0x48] sm:$0xf]
          %v2306 = vld [vmem:[%s4 + $0x4c] sm:$0xf]
          %v2307 = vld [vmem:[%s4 + $0x50] sm:$0xf]
          %v2308 = vld [vmem:[%s4 + $0x54] sm:$0xf]
          %v2309 = vld [vmem:[%s4 + $0x58] sm:$0xf]
          %v2310 = vld [vmem:[%s4 + $0x5c] sm:$0xf]
          %v2311 = vld [vmem:[%s4 + $0x60] sm:$0xf]
          %v2312 = vld [vmem:[%s4 + $0x64] sm:$0xf]
          %v2313 = vld [vmem:[%s4 + $0x68] sm:$0xf]
          %v2314 = vld [vmem:[%s4 + $0x6c] sm:$0xf]
          %v2315 = vld [vmem:[%s4 + $0x70] sm:$0xf]
          %v2316 = vld [vmem:[%s4 + $0x74] sm:$0xf]
          %v2317 = vld [vmem:[%s4 + $0x78] sm:$0xf]
          %v2318 = vld [vmem:[%s4 + $0x7c] sm:$0xf]
          %v2319 = vld [vmem:[%s5] sm:$0x1]
          %v2352 = vunpack.c.l.b16 %v2287
          %v2353 = vunpack.c.l.b16 %v2288
          %v2354 = vunpack.c.l.b16 %v2289
          %v2355 = vunpack.c.l.b16 %v2290
          %v2356 = vunpack.c.l.b16 %v2291
          %v2357 = vunpack.c.l.b16 %v2292
          %v2358 = vunpack.c.l.b16 %v2293
          %v2359 = vunpack.c.l.b16 %v2294
          %v2360 = vunpack.c.l.b16 %v2295
          %v2361 = vunpack.c.l.b16 %v2296
          %v2362 = vunpack.c.l.b16 %v2297
          %v2363 = vunpack.c.l.b16 %v2298
          %v2364 = vunpack.c.l.b16 %v2299
          %v2365 = vunpack.c.l.b16 %v2300
          %v2366 = vunpack.c.l.b16 %v2301
          %v2367 = vunpack.c.l.b16 %v2302
          %v2368 = vunpack.c.l.b16 %v2303
          %v2369 = vunpack.c.l.b16 %v2304
          %v2370 = vunpack.c.l.b16 %v2305
          %v2371 = vunpack.c.l.b16 %v2306
          %v2372 = vunpack.c.l.b16 %v2307
          %v2373 = vunpack.c.l.b16 %v2308
          %v2374 = vunpack.c.l.b16 %v2309
          %v2375 = vunpack.c.l.b16 %v2310
          %v2376 = vunpack.c.l.b16 %v2311
          %v2377 = vunpack.c.l.b16 %v2312
          %v2378 = vunpack.c.l.b16 %v2313
          %v2379 = vunpack.c.l.b16 %v2314
          %v2380 = vunpack.c.l.b16 %v2315
          %v2381 = vunpack.c.l.b16 %v2316
          %v2382 = vunpack.c.l.b16 %v2317
          %v2383 = vunpack.c.l.b16 %v2318
          %v2384 = vpack.c.b16 %v2353, %v2352
          %v2385 = vpack.c.b16 %v2355, %v2354
          %v2386 = vpack.c.b16 %v2357, %v2356
          %v2387 = vpack.c.b16 %v2359, %v2358
          %v2388 = vpack.c.b16 %v2361, %v2360
          %v2389 = vpack.c.b16 %v2363, %v2362
          %v2390 = vpack.c.b16 %v2365, %v2364
          %v2391 = vpack.c.b16 %v2367, %v2366
          %v2392 = vpack.c.b16 %v2369, %v2368
          %v2393 = vpack.c.b16 %v2371, %v2370
          %v2394 = vpack.c.b16 %v2373, %v2372
          %v2395 = vpack.c.b16 %v2375, %v2374
          %v2396 = vpack.c.b16 %v2377, %v2376
          %v2397 = vpack.c.b16 %v2379, %v2378
          %v2398 = vpack.c.b16 %v2381, %v2380
          %v2399 = vpack.c.b16 %v2383, %v2382
          %2416 = vmatprep.subr.bf16.mxu0 0
          %2417 = vmatpush1.bf16.msra.mxu0 %v2384
          %2418 = vmatprep.subr.bf16.mxu0 0
          %2419 = vmatpush1.bf16.msra.mxu0 %v2385
          %2420 = vmatprep.subr.bf16.mxu0 0
          %2421 = vmatpush1.bf16.msra.mxu0 %v2386
          %2422 = vmatprep.subr.bf16.mxu0 0
          %2423 = vmatpush1.bf16.msra.mxu0 %v2387
          %2424 = vmatprep.subr.bf16.mxu0 0
          %2425 = vmatpush1.bf16.msra.mxu0 %v2388
          %2426 = vmatprep.subr.bf16.mxu0 0
          %2427 = vmatpush1.bf16.msra.mxu0 %v2389
          %2428 = vmatprep.subr.bf16.mxu0 0
          %2429 = vmatpush1.bf16.msra.mxu0 %v2390
          %2430 = vmatprep.subr.bf16.mxu0 0
          %2431 = vmatpush1.bf16.msra.mxu0 %v2391
          %2432 = vmatprep.subr.bf16.mxu0 0
          %2433 = vmatpush1.bf16.msra.mxu0 %v2392
          %2434 = vmatprep.subr.bf16.mxu0 0
          %2435 = vmatpush1.bf16.msra.mxu0 %v2393
          %2436 = vmatprep.subr.bf16.mxu0 0
          %2437 = vmatpush1.bf16.msra.mxu0 %v2394
          %2438 = vmatprep.subr.bf16.mxu0 0
          %2439 = vmatpush1.bf16.msra.mxu0 %v2395
          %2440 = vmatprep.subr.bf16.mxu0 0
          %2441 = vmatpush1.bf16.msra.mxu0 %v2396
          %2442 = vmatprep.subr.bf16.mxu0 0
          %2443 = vmatpush1.bf16.msra.mxu0 %v2397
          %2444 = vmatprep.subr.bf16.mxu0 0
          %2445 = vmatpush1.bf16.msra.mxu0 %v2398
          %2446 = vmatprep.subr.bf16.mxu0 0
          %2447 = vmatpush1.bf16.msra.mxu0 %v2399
          %2448 = vmatprep.mubr.bf16.mxu0 %v2286
          %2449 = vmatmul.mubr.bf16.gmra.mrb[0].mxu0 %v2285
          %v2450 = vpop.f32.mrb[0].mxu0
          %v2451 = vadd.f32 %v2319, %v2450
          %v2452 = vpop.f32.mrb[0].mxu0
          %v2453 = vpop.f32.mrb[0].mxu0
          %v2454 = vpop.f32.mrb[0].mxu0
          %2455 = vdwg.mxu0
          %2456 = vst [vmem:[%s306] sm:$0x1] %v2451
        $region90: #{iris_rtdetr_vision_encoder_forward.1} parent=77 // pred_fallthru
          _
        %s2457 = sand.u32 %s173, 1
        %s2458 = scalar_lea.sflag [#allocation5], %s2457
        %s2459 = sand.u32 %s173, 1
        %s2460 = scalar_lea.vmem [#allocation4], %s2459
        // Predicated region
        $region91: #{iris_rtdetr_vision_encoder_forward.1} parent=77 // pred_check
          %p2461 = pneg %p183
        $region92: #{iris_rtdetr_vision_encoder_forward.1} parent=77 // pred_check_branch
          %2463 = sbr.rel (%p2461) target = $region94
        $region93: #{iris_rtdetr_vision_encoder_forward.1} parent=77 // pred_region
          %s2465 = ssub.s32 16, 16
          %2466 = vsyncadd %s2458, %s2465
          %s2467 = smul.addr %s24, 16
          %s2468 = scalar_lea.hbm %s6, %s2467
          %s2470 = sshll.u32 %s2460, 4
          %s2471 = int_to_ptr.vmem [resolvable:$true] %s2470
          %2473 = dma.vmem_to_hbm [thread:$0]  %s2471, 16, %s2468, %s2458
        $region94: #{iris_rtdetr_vision_encoder_forward.1} parent=77 // pred_fallthru
          _
      $region78: #{iris_rtdetr_vision_encoder_forward.1} parent=5 // pred_fallthru
        _
      %p2474 = scmp.le.s32.totalorder 2, %s15
      // Predicated region
      $region95: #{iris_rtdetr_vision_encoder_forward.1} parent=5 // pred_check
        %p2475 = pneg %p2474
      $region96: #{iris_rtdetr_vision_encoder_forward.1} parent=5 // pred_check_branch
        %2477 = sbr.rel (%p2475) target = $region98
      $region97: #{iris_rtdetr_vision_encoder_forward.1} parent=5 // pred_region
        %s2478 = ssub.s32 %s15, 2
        // Predicated region
        $region99: #{iris_rtdetr_vision_encoder_forward.1} parent=97 // pred_check
          %p2479 = pneg %p189
        $region100: #{iris_rtdetr_vision_encoder_forward.1} parent=97 // pred_check_branch
          %2481 = sbr.rel (%p2479) target = $region102
        $region101: #{iris_rtdetr_vision_encoder_forward.1} parent=97 // pred_region
          %s2482 = sand.u32 %s174, 1
          %s2483 = scalar_lea.sflag [#allocation5], %s2482
          %s2484 = sand.u32 %s174, 1
          %s2485 = scalar_lea.vmem [#allocation4], %s2484
          %2486 = dma.done %s2483, 16
        $region102: #{iris_rtdetr_vision_encoder_forward.1} parent=97 // pred_fallthru
          _
      $region98: #{iris_rtdetr_vision_encoder_forward.1} parent=5 // pred_fallthru
        _
    $region6: #{iris_rtdetr_vision_encoder_forward.1} parent=1 // loop_footer
      %s19 = sadd.s32 1, %s15
    $region7: #{iris_rtdetr_vision_encoder_forward.1} parent=1 // loop_footer_branch
      %14 = sbr.rel target = $region3
    $region8: #{iris_rtdetr_vision_encoder_forward.1} parent=1 // loop_exit
      _
    %2487 = vsyncpa [#allocation5], 1
    %s2488 = scalar_lea.sflag [#allocation5], 1
    %2489 = vsyncpa %s2488, 1

</llo_original>
